<compile_context>
chip_gen: v5e
topology: v5e:2x2
jax: 0.10.0
libtpu: 0.0.40
codegen_flags: <defaults>
</compile_context>

<pallas_src>
import functools

import jax
import jax.numpy as jnp
from jax.experimental import pallas as pl
from jax.experimental.pallas import tpu as pltpu

# ---------------- model configuration ----------------
N_AGENTS = 3
ACT_DIM = 2                       # single_agent_action_dim
OBS_DIM = 24                      # env_spec.observation_space.flat_dim
ENC_H0, ENC_H1 = 64, 64           # encoder_hidden_sizes
EMB = 64                          # embedding_dim
LSTM_H = 64                       # lstm_hidden_size
OUT_DIM = N_AGENTS * ACT_DIM      # Gaussian mean head output dim (6)
G4 = 4 * LSTM_H                   # 256: fused i|f|g|o gate width (2 x 128-lane vregs)

SB = 8                            # batch-tile size = sublane group
OBS_PAD = 32                      # obs feature dim padded to a multiple of 8

_F32 = jnp.float32

# ---- packed-parameter row layout (all offsets are multiples of 8 sublanes) ----
# encoder pack: lane width 64
R_W0, R_W1, R_W2 = 0, 32, 96          # (OBS_PAD,64), (64,64), (64,64)
R_B0, R_B1, R_B2 = 160, 168, 176      # one bias row each
ENC_PACK_ROWS = 184
# lstm pack: lane width 256
R_WIH, R_WHH, R_B = 0, 64, 128        # (64,256), (64,256), 1 bias row (b_ih + b_hh)
R_WM, R_BM = 136, 200                 # mean head, zero-padded to 256 lanes
LSTM_PACK_ROWS = 208


# ---------------- fused Pallas kernel ----------------
def fused_policy_kernel(T, x_ref, enc_ref, lstm_ref, out_ref,
                        gx_sc, hall_sc, h_sc, c_sc):
    # x_ref:    (T*SB, OBS_PAD)   time-major tile (8 sequences)
    # enc_ref:  (ENC_PACK_ROWS, 64)
    # lstm_ref: (LSTM_PACK_ROWS, 256)
    # out_ref:  (T*SB, 256)       lane-dense mean slab (first OUT_DIM lanes meaningful)
    # gx_sc:    (T*SB, 256)       hoisted x@W_ih + b, all gates / all timesteps
    # hall_sc:  (T*SB, LSTM_H)    all hidden states
    # h_sc/c_sc:(SB, LSTM_H)      recurrent state

    # ---- encoder MLP: Linear->tanh->Linear->tanh->Linear (no output nonlinearity) ----
    x = x_ref[...]
    h = jnp.tanh(jnp.dot(x, enc_ref[R_W0:R_W0 + OBS_PAD, :],
                         preferred_element_type=_F32) + enc_ref[R_B0:R_B0 + 1, :])
    h = jnp.tanh(jnp.dot(h, enc_ref[R_W1:R_W1 + ENC_H0, :],
                         preferred_element_type=_F32) + enc_ref[R_B1:R_B1 + 1, :])
    emb = (jnp.dot(h, enc_ref[R_W2:R_W2 + ENC_H1, :],
                   preferred_element_type=_F32) + enc_ref[R_B2:R_B2 + 1, :])  # (T*SB, EMB)

    # ---- hoisted input projection: ONE full-lane matmul for all gates & timesteps ----
    gx_sc[...] = (jnp.dot(emb, lstm_ref[R_WIH:R_WIH + EMB, :],
                          preferred_element_type=_F32)
                  + lstm_ref[R_B:R_B + 1, :])                                  # (T*SB, 256)

    h_sc[...] = jnp.zeros_like(h_sc)
    c_sc[...] = jnp.zeros_like(c_sc)

    whh = lstm_ref[R_WHH:R_WHH + LSTM_H, :]        # (64, 256), hoisted out of the loop

    # ---- serial recurrence, FULLY UNROLLED (T static): one fused MXU issue per step ----
    for t in range(T):                             # full unroll; static 8-aligned offsets
        r0 = t * SB
        hprev = h_sc[...]
        pre = gx_sc[r0:r0 + SB, :] + jnp.dot(hprev, whh,
                                             preferred_element_type=_F32)      # (SB, 256)
        pre_if = pre[:, :2 * LSTM_H]               # i|f half — 128-lane aligned (free)
        pre_go = pre[:, 2 * LSTM_H:]               # g|o half — 128-lane aligned (free)
        act_if = jax.nn.sigmoid(pre_if)            # both gates sigmoid: one full-width pass
        i_g = act_if[:, :LSTM_H]
        f_g = act_if[:, LSTM_H:]
        g_g = jnp.tanh(pre_go)[:, :LSTM_H]
        o_g = jax.nn.sigmoid(pre_go)[:, LSTM_H:]
        c_new = f_g * c_sc[...] + i_g * g_g
        h_new = o_g * jnp.tanh(c_new)
        c_sc[...] = c_new
        h_sc[...] = h_new
        hall_sc[r0:r0 + SB, :] = h_new

    # ---- lane-dense mean head: one matmul + one dense store after the loop ----
    out_ref[...] = (jnp.dot(hall_sc[...], lstm_ref[R_WM:R_WM + LSTM_H, :],
                            preferred_element_type=_F32)
                    + lstm_ref[R_BM:R_BM + 1, :])


# ---------------- one-time parameter packing (off the per-call hot path) ----------------
def prepare_params(p):
    enc = jnp.zeros((ENC_PACK_ROWS, ENC_H0), _F32)
    enc = enc.at[R_W0:R_W0 + OBS_DIM, :].set(p['enc_w0'])
    enc = enc.at[R_W1:R_W1 + ENC_H0, :].set(p['enc_w1'])
    enc = enc.at[R_W2:R_W2 + ENC_H1, :].set(p['enc_w2'])
    enc = enc.at[R_B0, :].set(p['enc_b0'][0])
    enc = enc.at[R_B1, :].set(p['enc_b1'][0])
    enc = enc.at[R_B2, :].set(p['enc_b2'][0])

    lstm = jnp.zeros((LSTM_PACK_ROWS, G4), _F32)
    lstm = lstm.at[R_WIH:R_WIH + EMB, :].set(p['wih'])
    lstm = lstm.at[R_WHH:R_WHH + LSTM_H, :].set(p['whh'])
    lstm = lstm.at[R_B, :].set(p['b'][0])
    lstm = lstm.at[R_WM:R_WM + LSTM_H, :OUT_DIM].set(p['wm'])
    lstm = lstm.at[R_BM, :OUT_DIM].set(p['bm'][0])
    # TODO(synk): bf16 weight storage for v6e/v7x MXU omitted to keep exact f32 parity
    # with the PyTorch reference (would require relaxing the 1e-4 parity tolerance).
    return {'enc_pack': enc, 'lstm_pack': lstm, 'log_std': p['log_std']}


# ---------------- wrapper ----------------
def policy_forward(obs_n, packed):
    """Mirrors CentralizedGaussianLSTMPolicy.forward (state_include_actions=False,
    share_std=True).  Returns (mean, std) of Independent(Normal(mean, std), 1)."""
    n_paths, T, _ = obs_n.shape
    nbt = -(-n_paths // SB)                 # batch tiles of 8 sequences each
    Bp = nbt * SB

    # time-major, batch-padded, feature-padded input: (nbt, T*SB, OBS_PAD)
    xb = jnp.zeros((Bp, T, OBS_PAD), _F32).at[:n_paths, :, :OBS_DIM].set(obs_n)
    x_in = xb.reshape(nbt, SB, T, OBS_PAD).transpose(0, 2, 1, 3).reshape(nbt, T * SB, OBS_PAD)

    vmem = pl.BlockSpec(memory_space=pltpu.MemorySpace.VMEM)
    mean_slab = pl.pallas_call(
        functools.partial(fused_policy_kernel, T),
        out_shape=jax.ShapeDtypeStruct((nbt, T * SB, G4), _F32),
        grid=(nbt,),
        in_specs=[pl.BlockSpec((None, T * SB, OBS_PAD), lambda bt: (bt, 0, 0)),
                  vmem,      # enc_pack: whole array resident in VMEM, fetched once
                  vmem],     # lstm_pack
        out_specs=pl.BlockSpec((None, T * SB, G4), lambda bt: (bt, 0, 0)),
        scratch_shapes=[
            pltpu.VMEM((T * SB, G4), _F32),        # gx_sc
            pltpu.VMEM((T * SB, LSTM_H), _F32),    # hall_sc
            pltpu.VMEM((SB, LSTM_H), _F32),        # h_sc
            pltpu.VMEM((SB, LSTM_H), _F32),        # c_sc
        ],
        compiler_params=pltpu.CompilerParams(dimension_semantics=("parallel",)),
    )(x_in, packed['enc_pack'], packed['lstm_pack'])

    # postprocess: (nbt, T*SB, 256) -> (n_paths, T, n_agents, act_dim)
    mean = mean_slab.reshape(nbt, T, SB, G4)[..., :OUT_DIM]
    mean = mean.transpose(0, 2, 1, 3).reshape(Bp, T, N_AGENTS, ACT_DIM)[:n_paths]

    # share_std: std = exp(log_std) broadcast to mean's shape (trivial glue, not hot path)
    std = jnp.broadcast_to(
        jnp.exp(packed['log_std']).reshape(1, 1, N_AGENTS, ACT_DIM), mean.shape)
    return mean, std
    # TODO(synk): share_std=False builds a MultivariateNormal covariance matrix (torch
    # distribution object); only share_std=True is kerneled.
    # TODO(synk): state_include_actions=True (shifted-action concat) is not kerneled.
    # TODO(synk): for very long rollouts, tile T with a second grid axis and size tiles
    # against v7x's 64 MiB physical / 32 MiB scoped VMEM (set vmem_limit_bytes explicitly);
    # everything here is sized for VMEM residency at typical rollout scales.


# ---------------- deterministic parameter init ----------------
def xavier_uniform(key, shape):
    fan_in, fan_out = shape
    limit = (6.0 / (fan_in + fan_out)) ** 0.5
    return jax.random.uniform(key, shape, _F32, -limit, limit)


def init_params(key):
    ks = jax.random.split(key, 8)
    k = 1.0 / (LSTM_H ** 0.5)
    return {
        # encoder (weights stored (in, out) so the kernel does x @ W)
        'enc_w0': xavier_uniform(ks[0], (OBS_DIM, ENC_H0)),
        'enc_b0': jnp.zeros((1, ENC_H0), _F32),
        'enc_w1': xavier_uniform(ks[1], (ENC_H0, ENC_H1)),
        'enc_b1': jnp.zeros((1, ENC_H1), _F32),
        'enc_w2': xavier_uniform(ks[2], (ENC_H1, EMB)),
        'enc_b2': jnp.zeros((1, EMB), _F32),
        # LSTM (torch default init: U(-1/sqrt(H), 1/sqrt(H)); gate order i,f,g,o)
        'wih': jax.random.uniform(ks[3], (EMB, G4), _F32, -k, k),
        'whh': jax.random.uniform(ks[4], (LSTM_H, G4), _F32, -k, k),
        'b': (jax.random.uniform(ks[5], (1, G4), _F32, -k, k)
              + jax.random.uniform(ks[6], (1, G4), _F32, -k, k)),
        # Gaussian mean head + shared log_std (init_std = 1.0)
        'wm': xavier_uniform(ks[7], (LSTM_H, OUT_DIM)),
        'bm': jnp.zeros((1, OUT_DIM), _F32),
        'log_std': jnp.zeros((OUT_DIM,), _F32),
    }


# ---------------- pure-JAX reference (for correctness check) ----------------
def ref_forward(obs_n, p):
    B, T, _ = obs_n.shape
    x = obs_n.reshape(B * T, OBS_DIM)
    h = jnp.tanh(x @ p['enc_w0'] + p['enc_b0'])
    h = jnp.tanh(h @ p['enc_w1'] + p['enc_b1'])
    emb = (h @ p['enc_w2'] + p['enc_b2']).reshape(B, T, EMB).transpose(1, 0, 2)

    def step(carry, xt):
        hp, cp = carry
        gates = xt @ p['wih'] + hp @ p['whh'] + p['b'][0]
        i = jax.nn.sigmoid(gates[:, :LSTM_H])
        f = jax.nn.sigmoid(gates[:, LSTM_H:2 * LSTM_H])
        g = jnp.tanh(gates[:, 2 * LSTM_H:3 * LSTM_H])
        o = jax.nn.sigmoid(gates[:, 3 * LSTM_H:])
        c = f * cp + i * g
        hh = o * jnp.tanh(c)
        return (hh, c), hh @ p['wm'] + p['bm'][0]

    init = (jnp.zeros((B, LSTM_H), _F32), jnp.zeros((B, LSTM_H), _F32))
    _, means = jax.lax.scan(step, init, emb)
    return means.reshape(T, B, N_AGENTS, ACT_DIM).transpose(1, 0, 2, 3)


# ---------------- main ----------------
if __name__ == "__main__":
    key = jax.random.PRNGKey(0)
    pkey, okey = jax.random.split(key)
    params = init_params(pkey)
    packed = prepare_params(params)          # one-time packing, off the per-call hot path

    n_paths, max_path_len = 2, 8
    obs_n = jax.random.normal(okey, (n_paths, max_path_len, OBS_DIM), _F32)

    mean, std = jax.jit(policy_forward)(obs_n, packed)
    mean = jax.block_until_ready(mean)
    std = jax.block_until_ready(std)

    ref_mean = ref_forward(obs_n, params)
    assert mean.shape == (n_paths, max_path_len, N_AGENTS, ACT_DIM)
    assert std.shape == mean.shape
    assert bool(jnp.allclose(mean, ref_mean, atol=1e-3, rtol=1e-3)), "mismatch vs reference"
    ref_std = jnp.exp(params['log_std']).reshape(1, 1, N_AGENTS, ACT_DIM) * jnp.ones_like(std)
    assert bool(jnp.allclose(std, ref_std)), "std mismatch"

    print("KERNEL_OK")
</pallas_src>

<mosaic_0001>
module attributes {stable_mosaic.version = 11 : i64} {
  func.func @fused_policy_kernel(%arg0: i32, %arg1: memref<1x64x32xf32, #tpu.memory_space<vmem>>, %arg2: memref<184x64xf32, #tpu.memory_space<vmem>>, %arg3: memref<208x256xf32, #tpu.memory_space<vmem>>, %arg4: memref<1x64x256xf32, #tpu.memory_space<vmem>>, %arg5: memref<64x256xf32, #tpu.memory_space<vmem>>, %arg6: memref<64x64xf32, #tpu.memory_space<vmem>>, %arg7: memref<8x64xf32, #tpu.memory_space<vmem>>, %arg8: memref<8x64xf32, #tpu.memory_space<vmem>>) attributes {dimension_semantics = [#tpu.dimension_semantics<parallel>], iteration_bounds = array<i64: 1>, scalar_prefetch = 0 : i64, scratch_operands = 4 : i64, tpu.core_type = #tpu.core_type<tc>, window_params = [{transform_indices = @transform_0, window_bounds = array<i64: 1, 64, 32>}, {pipeline_mode = #tpu.pipeline_mode<synchronous>, transform_indices = @transform_1, window_bounds = array<i64: 184, 64>}, {pipeline_mode = #tpu.pipeline_mode<synchronous>, transform_indices = @transform_2, window_bounds = array<i64: 208, 256>}, {transform_indices = @transform_3, window_bounds = array<i64: 1, 64, 256>}]} {
    %c0 = arith.constant 0 : index
    %c0_0 = arith.constant 0 : index
    %c0_1 = arith.constant 0 : index
    %0 = vector.load %arg1[%c0, %c0_0, %c0_1] : memref<1x64x32xf32, #tpu.memory_space<vmem>>, vector<1x64x32xf32>
    %1 = vector.shape_cast %0 : vector<1x64x32xf32> to vector<64x32xf32>
    %c0_2 = arith.constant 0 : index
    %c0_3 = arith.constant 0 : index
    %2 = vector.load %arg2[%c0_2, %c0_3] : memref<184x64xf32, #tpu.memory_space<vmem>>, vector<32x64xf32>
    %cst = arith.constant dense<0.000000e+00> : vector<64x64xf32>
    %3 = tpu.matmul %1, %2, %cst {dimension_numbers = #tpu.dot_dimension_numbers<[1], [0], [0], [1], [0, 0, 1, 1], [], []>} : vector<64x32xf32>, vector<32x64xf32>, vector<64x64xf32> -> vector<64x64xf32>
    %c160 = arith.constant 160 : index
    %c0_4 = arith.constant 0 : index
    %4 = vector.load %arg2[%c160, %c0_4] : memref<184x64xf32, #tpu.memory_space<vmem>>, vector<1x64xf32>
    %5 = vector.broadcast %4 : vector<1x64xf32> to vector<64x64xf32>
    %6 = arith.addf %3, %5 : vector<64x64xf32>
    %7 = math.tanh %6 : vector<64x64xf32>
    %c32 = arith.constant 32 : index
    %c0_5 = arith.constant 0 : index
    %8 = vector.load %arg2[%c32, %c0_5] : memref<184x64xf32, #tpu.memory_space<vmem>>, vector<64x64xf32>
    %cst_6 = arith.constant dense<0.000000e+00> : vector<64x64xf32>
    %9 = tpu.matmul %7, %8, %cst_6 {dimension_numbers = #tpu.dot_dimension_numbers<[1], [0], [0], [1], [0, 0, 1, 1], [], []>} : vector<64x64xf32>, vector<64x64xf32>, vector<64x64xf32> -> vector<64x64xf32>
    %c168 = arith.constant 168 : index
    %c0_7 = arith.constant 0 : index
    %10 = vector.load %arg2[%c168, %c0_7] : memref<184x64xf32, #tpu.memory_space<vmem>>, vector<1x64xf32>
    %11 = vector.broadcast %10 : vector<1x64xf32> to vector<64x64xf32>
    %12 = arith.addf %9, %11 : vector<64x64xf32>
    %13 = math.tanh %12 : vector<64x64xf32>
    %c96 = arith.constant 96 : index
    %c0_8 = arith.constant 0 : index
    %14 = vector.load %arg2[%c96, %c0_8] : memref<184x64xf32, #tpu.memory_space<vmem>>, vector<64x64xf32>
    %cst_9 = arith.constant dense<0.000000e+00> : vector<64x64xf32>
    %15 = tpu.matmul %13, %14, %cst_9 {dimension_numbers = #tpu.dot_dimension_numbers<[1], [0], [0], [1], [0, 0, 1, 1], [], []>} : vector<64x64xf32>, vector<64x64xf32>, vector<64x64xf32> -> vector<64x64xf32>
    %c176 = arith.constant 176 : index
    %c0_10 = arith.constant 0 : index
    %16 = vector.load %arg2[%c176, %c0_10] : memref<184x64xf32, #tpu.memory_space<vmem>>, vector<1x64xf32>
    %17 = vector.broadcast %16 : vector<1x64xf32> to vector<64x64xf32>
    %18 = arith.addf %15, %17 : vector<64x64xf32>
    %c0_11 = arith.constant 0 : index
    %c0_12 = arith.constant 0 : index
    %19 = vector.load %arg3[%c0_11, %c0_12] : memref<208x256xf32, #tpu.memory_space<vmem>>, vector<64x256xf32>
    %cst_13 = arith.constant dense<0.000000e+00> : vector<64x256xf32>
    %20 = tpu.matmul %18, %19, %cst_13 {dimension_numbers = #tpu.dot_dimension_numbers<[1], [0], [0], [1], [0, 0, 1, 1], [], []>} : vector<64x64xf32>, vector<64x256xf32>, vector<64x256xf32> -> vector<64x256xf32>
    %c128 = arith.constant 128 : index
    %c0_14 = arith.constant 0 : index
    %21 = vector.load %arg3[%c128, %c0_14] : memref<208x256xf32, #tpu.memory_space<vmem>>, vector<1x256xf32>
    %22 = vector.broadcast %21 : vector<1x256xf32> to vector<64x256xf32>
    %23 = arith.addf %20, %22 : vector<64x256xf32>
    %c0_15 = arith.constant 0 : index
    %c0_16 = arith.constant 0 : index
    %24 = vector.load %arg5[%c0_15, %c0_16] : memref<64x256xf32, #tpu.memory_space<vmem>>, vector<64x256xf32>
    tpu.vector_store %arg5[%c0_15, %c0_16], %23 {strides = array<i32>} : memref<64x256xf32, #tpu.memory_space<vmem>>, vector<64x256xf32>,
    %cst_17 = arith.constant 0.000000e+00 : f32
    %25 = vector.broadcast %cst_17 : f32 to vector<8x64xf32>
    %c0_18 = arith.constant 0 : index
    %c0_19 = arith.constant 0 : index
    %26 = vector.load %arg7[%c0_18, %c0_19] : memref<8x64xf32, #tpu.memory_space<vmem>>, vector<8x64xf32>
    tpu.vector_store %arg7[%c0_18, %c0_19], %25 {strides = array<i32>} : memref<8x64xf32, #tpu.memory_space<vmem>>, vector<8x64xf32>,
    %cst_20 = arith.constant 0.000000e+00 : f32
    %27 = vector.broadcast %cst_20 : f32 to vector<8x64xf32>
    %c0_21 = arith.constant 0 : index
    %c0_22 = arith.constant 0 : index
    %28 = vector.load %arg8[%c0_21, %c0_22] : memref<8x64xf32, #tpu.memory_space<vmem>>, vector<8x64xf32>
    tpu.vector_store %arg8[%c0_21, %c0_22], %27 {strides = array<i32>} : memref<8x64xf32, #tpu.memory_space<vmem>>, vector<8x64xf32>,
    %c64 = arith.constant 64 : index
    %c0_23 = arith.constant 0 : index
    %29 = vector.load %arg3[%c64, %c0_23] : memref<208x256xf32, #tpu.memory_space<vmem>>, vector<64x256xf32>
    %c0_24 = arith.constant 0 : index
    %c0_25 = arith.constant 0 : index
    %30 = vector.load %arg7[%c0_24, %c0_25] : memref<8x64xf32, #tpu.memory_space<vmem>>, vector<8x64xf32>
    %c0_26 = arith.constant 0 : index
    %c0_27 = arith.constant 0 : index
    %31 = vector.load %arg5[%c0_26, %c0_27] : memref<64x256xf32, #tpu.memory_space<vmem>>, vector<8x256xf32>
    %cst_28 = arith.constant dense<0.000000e+00> : vector<8x256xf32>
    %32 = tpu.matmul %30, %29, %cst_28 {dimension_numbers = #tpu.dot_dimension_numbers<[1], [0], [0], [1], [0, 0, 1, 1], [], []>} : vector<8x64xf32>, vector<64x256xf32>, vector<8x256xf32> -> vector<8x256xf32>
    %33 = arith.addf %31, %32 : vector<8x256xf32>
    %34 = vector.extract_strided_slice %33 {offsets = [0, 0], sizes = [8, 128], strides = [1, 1]} : vector<8x256xf32> to vector<8x128xf32>
    %35 = vector.extract_strided_slice %33 {offsets = [0, 128], sizes = [8, 128], strides = [1, 1]} : vector<8x256xf32> to vector<8x128xf32>
    %36 = arith.negf %34 : vector<8x128xf32>
    %37 = math.exp %36 : vector<8x128xf32>
    %cst_29 = arith.constant 1.000000e+00 : f32
    %38 = vector.broadcast %cst_29 : f32 to vector<8x128xf32>
    %39 = arith.addf %38, %37 : vector<8x128xf32>
    %40 = arith.divf %38, %39 : vector<8x128xf32>
    %41 = vector.extract_strided_slice %40 {offsets = [0, 0], sizes = [8, 64], strides = [1, 1]} : vector<8x128xf32> to vector<8x64xf32>
    %42 = vector.extract_strided_slice %40 {offsets = [0, 64], sizes = [8, 64], strides = [1, 1]} : vector<8x128xf32> to vector<8x64xf32>
    %43 = math.tanh %35 : vector<8x128xf32>
    %44 = vector.extract_strided_slice %43 {offsets = [0, 0], sizes = [8, 64], strides = [1, 1]} : vector<8x128xf32> to vector<8x64xf32>
    %45 = arith.negf %35 : vector<8x128xf32>
    %46 = math.exp %45 : vector<8x128xf32>
    %cst_30 = arith.constant 1.000000e+00 : f32
    %47 = vector.broadcast %cst_30 : f32 to vector<8x128xf32>
    %48 = arith.addf %47, %46 : vector<8x128xf32>
    %49 = arith.divf %47, %48 : vector<8x128xf32>
    %50 = vector.extract_strided_slice %49 {offsets = [0, 64], sizes = [8, 64], strides = [1, 1]} : vector<8x128xf32> to vector<8x64xf32>
    %c0_31 = arith.constant 0 : index
    %c0_32 = arith.constant 0 : index
    %51 = vector.load %arg8[%c0_31, %c0_32] : memref<8x64xf32, #tpu.memory_space<vmem>>, vector<8x64xf32>
    %52 = arith.mulf %42, %51 : vector<8x64xf32>
    %53 = arith.mulf %41, %44 : vector<8x64xf32>
    %54 = arith.addf %52, %53 : vector<8x64xf32>
    %55 = math.tanh %54 : vector<8x64xf32>
    %56 = arith.mulf %50, %55 : vector<8x64xf32>
    %c0_33 = arith.constant 0 : index
    %c0_34 = arith.constant 0 : index
    %57 = vector.load %arg8[%c0_33, %c0_34] : memref<8x64xf32, #tpu.memory_space<vmem>>, vector<8x64xf32>
    tpu.vector_store %arg8[%c0_33, %c0_34], %54 {strides = array<i32>} : memref<8x64xf32, #tpu.memory_space<vmem>>, vector<8x64xf32>,
    %c0_35 = arith.constant 0 : index
    %c0_36 = arith.constant 0 : index
    %58 = vector.load %arg7[%c0_35, %c0_36] : memref<8x64xf32, #tpu.memory_space<vmem>>, vector<8x64xf32>
    tpu.vector_store %arg7[%c0_35, %c0_36], %56 {strides = array<i32>} : memref<8x64xf32, #tpu.memory_space<vmem>>, vector<8x64xf32>,
    %c0_37 = arith.constant 0 : index
    %c0_38 = arith.constant 0 : index
    %59 = vector.load %arg6[%c0_37, %c0_38] : memref<64x64xf32, #tpu.memory_space<vmem>>, vector<8x64xf32>
    tpu.vector_store %arg6[%c0_37, %c0_38], %56 {strides = array<i32>} : memref<64x64xf32, #tpu.memory_space<vmem>>, vector<8x64xf32>,
    %c0_39 = arith.constant 0 : index
    %c0_40 = arith.constant 0 : index
    %60 = vector.load %arg7[%c0_39, %c0_40] : memref<8x64xf32, #tpu.memory_space<vmem>>, vector<8x64xf32>
    %c8 = arith.constant 8 : index
    %c0_41 = arith.constant 0 : index
    %61 = vector.load %arg5[%c8, %c0_41] : memref<64x256xf32, #tpu.memory_space<vmem>>, vector<8x256xf32>
    %cst_42 = arith.constant dense<0.000000e+00> : vector<8x256xf32>
    %62 = tpu.matmul %60, %29, %cst_42 {dimension_numbers = #tpu.dot_dimension_numbers<[1], [0], [0], [1], [0, 0, 1, 1], [], []>} : vector<8x64xf32>, vector<64x256xf32>, vector<8x256xf32> -> vector<8x256xf32>
    %63 = arith.addf %61, %62 : vector<8x256xf32>
    %64 = vector.extract_strided_slice %63 {offsets = [0, 0], sizes = [8, 128], strides = [1, 1]} : vector<8x256xf32> to vector<8x128xf32>
    %65 = vector.extract_strided_slice %63 {offsets = [0, 128], sizes = [8, 128], strides = [1, 1]} : vector<8x256xf32> to vector<8x128xf32>
    %66 = arith.negf %64 : vector<8x128xf32>
    %67 = math.exp %66 : vector<8x128xf32>
    %cst_43 = arith.constant 1.000000e+00 : f32
    %68 = vector.broadcast %cst_43 : f32 to vector<8x128xf32>
    %69 = arith.addf %68, %67 : vector<8x128xf32>
    %70 = arith.divf %68, %69 : vector<8x128xf32>
    %71 = vector.extract_strided_slice %70 {offsets = [0, 0], sizes = [8, 64], strides = [1, 1]} : vector<8x128xf32> to vector<8x64xf32>
    %72 = vector.extract_strided_slice %70 {offsets = [0, 64], sizes = [8, 64], strides = [1, 1]} : vector<8x128xf32> to vector<8x64xf32>
    %73 = math.tanh %65 : vector<8x128xf32>
    %74 = vector.extract_strided_slice %73 {offsets = [0, 0], sizes = [8, 64], strides = [1, 1]} : vector<8x128xf32> to vector<8x64xf32>
    %75 = arith.negf %65 : vector<8x128xf32>
    %76 = math.exp %75 : vector<8x128xf32>
    %cst_44 = arith.constant 1.000000e+00 : f32
    %77 = vector.broadcast %cst_44 : f32 to vector<8x128xf32>
    %78 = arith.addf %77, %76 : vector<8x128xf32>
    %79 = arith.divf %77, %78 : vector<8x128xf32>
    %80 = vector.extract_strided_slice %79 {offsets = [0, 64], sizes = [8, 64], strides = [1, 1]} : vector<8x128xf32> to vector<8x64xf32>
    %c0_45 = arith.constant 0 : index
    %c0_46 = arith.constant 0 : index
    %81 = vector.load %arg8[%c0_45, %c0_46] : memref<8x64xf32, #tpu.memory_space<vmem>>, vector<8x64xf32>
    %82 = arith.mulf %72, %81 : vector<8x64xf32>
    %83 = arith.mulf %71, %74 : vector<8x64xf32>
    %84 = arith.addf %82, %83 : vector<8x64xf32>
    %85 = math.tanh %84 : vector<8x64xf32>
    %86 = arith.mulf %80, %85 : vector<8x64xf32>
    %c0_47 = arith.constant 0 : index
    %c0_48 = arith.constant 0 : index
    %87 = vector.load %arg8[%c0_47, %c0_48] : memref<8x64xf32, #tpu.memory_space<vmem>>, vector<8x64xf32>
    tpu.vector_store %arg8[%c0_47, %c0_48], %84 {strides = array<i32>} : memref<8x64xf32, #tpu.memory_space<vmem>>, vector<8x64xf32>,
    %c0_49 = arith.constant 0 : index
    %c0_50 = arith.constant 0 : index
    %88 = vector.load %arg7[%c0_49, %c0_50] : memref<8x64xf32, #tpu.memory_space<vmem>>, vector<8x64xf32>
    tpu.vector_store %arg7[%c0_49, %c0_50], %86 {strides = array<i32>} : memref<8x64xf32, #tpu.memory_space<vmem>>, vector<8x64xf32>,
    %c8_51 = arith.constant 8 : index
    %c0_52 = arith.constant 0 : index
    %89 = vector.load %arg6[%c8_51, %c0_52] : memref<64x64xf32, #tpu.memory_space<vmem>>, vector<8x64xf32>
    tpu.vector_store %arg6[%c8_51, %c0_52], %86 {strides = array<i32>} : memref<64x64xf32, #tpu.memory_space<vmem>>, vector<8x64xf32>,
    %c0_53 = arith.constant 0 : index
    %c0_54 = arith.constant 0 : index
    %90 = vector.load %arg7[%c0_53, %c0_54] : memref<8x64xf32, #tpu.memory_space<vmem>>, vector<8x64xf32>
    %c16 = arith.constant 16 : index
    %c0_55 = arith.constant 0 : index
    %91 = vector.load %arg5[%c16, %c0_55] : memref<64x256xf32, #tpu.memory_space<vmem>>, vector<8x256xf32>
    %cst_56 = arith.constant dense<0.000000e+00> : vector<8x256xf32>
    %92 = tpu.matmul %90, %29, %cst_56 {dimension_numbers = #tpu.dot_dimension_numbers<[1], [0], [0], [1], [0, 0, 1, 1], [], []>} : vector<8x64xf32>, vector<64x256xf32>, vector<8x256xf32> -> vector<8x256xf32>
    %93 = arith.addf %91, %92 : vector<8x256xf32>
    %94 = vector.extract_strided_slice %93 {offsets = [0, 0], sizes = [8, 128], strides = [1, 1]} : vector<8x256xf32> to vector<8x128xf32>
    %95 = vector.extract_strided_slice %93 {offsets = [0, 128], sizes = [8, 128], strides = [1, 1]} : vector<8x256xf32> to vector<8x128xf32>
    %96 = arith.negf %94 : vector<8x128xf32>
    %97 = math.exp %96 : vector<8x128xf32>
    %cst_57 = arith.constant 1.000000e+00 : f32
    %98 = vector.broadcast %cst_57 : f32 to vector<8x128xf32>
    %99 = arith.addf %98, %97 : vector<8x128xf32>
    %100 = arith.divf %98, %99 : vector<8x128xf32>
    %101 = vector.extract_strided_slice %100 {offsets = [0, 0], sizes = [8, 64], strides = [1, 1]} : vector<8x128xf32> to vector<8x64xf32>
    %102 = vector.extract_strided_slice %100 {offsets = [0, 64], sizes = [8, 64], strides = [1, 1]} : vector<8x128xf32> to vector<8x64xf32>
    %103 = math.tanh %95 : vector<8x128xf32>
    %104 = vector.extract_strided_slice %103 {offsets = [0, 0], sizes = [8, 64], strides = [1, 1]} : vector<8x128xf32> to vector<8x64xf32>
    %105 = arith.negf %95 : vector<8x128xf32>
    %106 = math.exp %105 : vector<8x128xf32>
    %cst_58 = arith.constant 1.000000e+00 : f32
    %107 = vector.broadcast %cst_58 : f32 to vector<8x128xf32>
    %108 = arith.addf %107, %106 : vector<8x128xf32>
    %109 = arith.divf %107, %108 : vector<8x128xf32>
    %110 = vector.extract_strided_slice %109 {offsets = [0, 64], sizes = [8, 64], strides = [1, 1]} : vector<8x128xf32> to vector<8x64xf32>
    %c0_59 = arith.constant 0 : index
    %c0_60 = arith.constant 0 : index
    %111 = vector.load %arg8[%c0_59, %c0_60] : memref<8x64xf32, #tpu.memory_space<vmem>>, vector<8x64xf32>
    %112 = arith.mulf %102, %111 : vector<8x64xf32>
    %113 = arith.mulf %101, %104 : vector<8x64xf32>
    %114 = arith.addf %112, %113 : vector<8x64xf32>
    %115 = math.tanh %114 : vector<8x64xf32>
    %116 = arith.mulf %110, %115 : vector<8x64xf32>
    %c0_61 = arith.constant 0 : index
    %c0_62 = arith.constant 0 : index
    %117 = vector.load %arg8[%c0_61, %c0_62] : memref<8x64xf32, #tpu.memory_space<vmem>>, vector<8x64xf32>
    tpu.vector_store %arg8[%c0_61, %c0_62], %114 {strides = array<i32>} : memref<8x64xf32, #tpu.memory_space<vmem>>, vector<8x64xf32>,
    %c0_63 = arith.constant 0 : index
    %c0_64 = arith.constant 0 : index
    %118 = vector.load %arg7[%c0_63, %c0_64] : memref<8x64xf32, #tpu.memory_space<vmem>>, vector<8x64xf32>
    tpu.vector_store %arg7[%c0_63, %c0_64], %116 {strides = array<i32>} : memref<8x64xf32, #tpu.memory_space<vmem>>, vector<8x64xf32>,
    %c16_65 = arith.constant 16 : index
    %c0_66 = arith.constant 0 : index
    %119 = vector.load %arg6[%c16_65, %c0_66] : memref<64x64xf32, #tpu.memory_space<vmem>>, vector<8x64xf32>
    tpu.vector_store %arg6[%c16_65, %c0_66], %116 {strides = array<i32>} : memref<64x64xf32, #tpu.memory_space<vmem>>, vector<8x64xf32>,
    %c0_67 = arith.constant 0 : index
    %c0_68 = arith.constant 0 : index
    %120 = vector.load %arg7[%c0_67, %c0_68] : memref<8x64xf32, #tpu.memory_space<vmem>>, vector<8x64xf32>
    %c24 = arith.constant 24 : index
    %c0_69 = arith.constant 0 : index
    %121 = vector.load %arg5[%c24, %c0_69] : memref<64x256xf32, #tpu.memory_space<vmem>>, vector<8x256xf32>
    %cst_70 = arith.constant dense<0.000000e+00> : vector<8x256xf32>
    %122 = tpu.matmul %120, %29, %cst_70 {dimension_numbers = #tpu.dot_dimension_numbers<[1], [0], [0], [1], [0, 0, 1, 1], [], []>} : vector<8x64xf32>, vector<64x256xf32>, vector<8x256xf32> -> vector<8x256xf32>
    %123 = arith.addf %121, %122 : vector<8x256xf32>
    %124 = vector.extract_strided_slice %123 {offsets = [0, 0], sizes = [8, 128], strides = [1, 1]} : vector<8x256xf32> to vector<8x128xf32>
    %125 = vector.extract_strided_slice %123 {offsets = [0, 128], sizes = [8, 128], strides = [1, 1]} : vector<8x256xf32> to vector<8x128xf32>
    %126 = arith.negf %124 : vector<8x128xf32>
    %127 = math.exp %126 : vector<8x128xf32>
    %cst_71 = arith.constant 1.000000e+00 : f32
    %128 = vector.broadcast %cst_71 : f32 to vector<8x128xf32>
    %129 = arith.addf %128, %127 : vector<8x128xf32>
    %130 = arith.divf %128, %129 : vector<8x128xf32>
    %131 = vector.extract_strided_slice %130 {offsets = [0, 0], sizes = [8, 64], strides = [1, 1]} : vector<8x128xf32> to vector<8x64xf32>
    %132 = vector.extract_strided_slice %130 {offsets = [0, 64], sizes = [8, 64], strides = [1, 1]} : vector<8x128xf32> to vector<8x64xf32>
    %133 = math.tanh %125 : vector<8x128xf32>
    %134 = vector.extract_strided_slice %133 {offsets = [0, 0], sizes = [8, 64], strides = [1, 1]} : vector<8x128xf32> to vector<8x64xf32>
    %135 = arith.negf %125 : vector<8x128xf32>
    %136 = math.exp %135 : vector<8x128xf32>
    %cst_72 = arith.constant 1.000000e+00 : f32
    %137 = vector.broadcast %cst_72 : f32 to vector<8x128xf32>
    %138 = arith.addf %137, %136 : vector<8x128xf32>
    %139 = arith.divf %137, %138 : vector<8x128xf32>
    %140 = vector.extract_strided_slice %139 {offsets = [0, 64], sizes = [8, 64], strides = [1, 1]} : vector<8x128xf32> to vector<8x64xf32>
    %c0_73 = arith.constant 0 : index
    %c0_74 = arith.constant 0 : index
    %141 = vector.load %arg8[%c0_73, %c0_74] : memref<8x64xf32, #tpu.memory_space<vmem>>, vector<8x64xf32>
    %142 = arith.mulf %132, %141 : vector<8x64xf32>
    %143 = arith.mulf %131, %134 : vector<8x64xf32>
    %144 = arith.addf %142, %143 : vector<8x64xf32>
    %145 = math.tanh %144 : vector<8x64xf32>
    %146 = arith.mulf %140, %145 : vector<8x64xf32>
    %c0_75 = arith.constant 0 : index
    %c0_76 = arith.constant 0 : index
    %147 = vector.load %arg8[%c0_75, %c0_76] : memref<8x64xf32, #tpu.memory_space<vmem>>, vector<8x64xf32>
    tpu.vector_store %arg8[%c0_75, %c0_76], %144 {strides = array<i32>} : memref<8x64xf32, #tpu.memory_space<vmem>>, vector<8x64xf32>,
    %c0_77 = arith.constant 0 : index
    %c0_78 = arith.constant 0 : index
    %148 = vector.load %arg7[%c0_77, %c0_78] : memref<8x64xf32, #tpu.memory_space<vmem>>, vector<8x64xf32>
    tpu.vector_store %arg7[%c0_77, %c0_78], %146 {strides = array<i32>} : memref<8x64xf32, #tpu.memory_space<vmem>>, vector<8x64xf32>,
    %c24_79 = arith.constant 24 : index
    %c0_80 = arith.constant 0 : index
    %149 = vector.load %arg6[%c24_79, %c0_80] : memref<64x64xf32, #tpu.memory_space<vmem>>, vector<8x64xf32>
    tpu.vector_store %arg6[%c24_79, %c0_80], %146 {strides = array<i32>} : memref<64x64xf32, #tpu.memory_space<vmem>>, vector<8x64xf32>,
    %c0_81 = arith.constant 0 : index
    %c0_82 = arith.constant 0 : index
    %150 = vector.load %arg7[%c0_81, %c0_82] : memref<8x64xf32, #tpu.memory_space<vmem>>, vector<8x64xf32>
    %c32_83 = arith.constant 32 : index
    %c0_84 = arith.constant 0 : index
    %151 = vector.load %arg5[%c32_83, %c0_84] : memref<64x256xf32, #tpu.memory_space<vmem>>, vector<8x256xf32>
    %cst_85 = arith.constant dense<0.000000e+00> : vector<8x256xf32>
    %152 = tpu.matmul %150, %29, %cst_85 {dimension_numbers = #tpu.dot_dimension_numbers<[1], [0], [0], [1], [0, 0, 1, 1], [], []>} : vector<8x64xf32>, vector<64x256xf32>, vector<8x256xf32> -> vector<8x256xf32>
    %153 = arith.addf %151, %152 : vector<8x256xf32>
    %154 = vector.extract_strided_slice %153 {offsets = [0, 0], sizes = [8, 128], strides = [1, 1]} : vector<8x256xf32> to vector<8x128xf32>
    %155 = vector.extract_strided_slice %153 {offsets = [0, 128], sizes = [8, 128], strides = [1, 1]} : vector<8x256xf32> to vector<8x128xf32>
    %156 = arith.negf %154 : vector<8x128xf32>
    %157 = math.exp %156 : vector<8x128xf32>
    %cst_86 = arith.constant 1.000000e+00 : f32
    %158 = vector.broadcast %cst_86 : f32 to vector<8x128xf32>
    %159 = arith.addf %158, %157 : vector<8x128xf32>
    %160 = arith.divf %158, %159 : vector<8x128xf32>
    %161 = vector.extract_strided_slice %160 {offsets = [0, 0], sizes = [8, 64], strides = [1, 1]} : vector<8x128xf32> to vector<8x64xf32>
    %162 = vector.extract_strided_slice %160 {offsets = [0, 64], sizes = [8, 64], strides = [1, 1]} : vector<8x128xf32> to vector<8x64xf32>
    %163 = math.tanh %155 : vector<8x128xf32>
    %164 = vector.extract_strided_slice %163 {offsets = [0, 0], sizes = [8, 64], strides = [1, 1]} : vector<8x128xf32> to vector<8x64xf32>
    %165 = arith.negf %155 : vector<8x128xf32>
    %166 = math.exp %165 : vector<8x128xf32>
    %cst_87 = arith.constant 1.000000e+00 : f32
    %167 = vector.broadcast %cst_87 : f32 to vector<8x128xf32>
    %168 = arith.addf %167, %166 : vector<8x128xf32>
    %169 = arith.divf %167, %168 : vector<8x128xf32>
    %170 = vector.extract_strided_slice %169 {offsets = [0, 64], sizes = [8, 64], strides = [1, 1]} : vector<8x128xf32> to vector<8x64xf32>
    %c0_88 = arith.constant 0 : index
    %c0_89 = arith.constant 0 : index
    %171 = vector.load %arg8[%c0_88, %c0_89] : memref<8x64xf32, #tpu.memory_space<vmem>>, vector<8x64xf32>
    %172 = arith.mulf %162, %171 : vector<8x64xf32>
    %173 = arith.mulf %161, %164 : vector<8x64xf32>
    %174 = arith.addf %172, %173 : vector<8x64xf32>
    %175 = math.tanh %174 : vector<8x64xf32>
    %176 = arith.mulf %170, %175 : vector<8x64xf32>
    %c0_90 = arith.constant 0 : index
    %c0_91 = arith.constant 0 : index
    %177 = vector.load %arg8[%c0_90, %c0_91] : memref<8x64xf32, #tpu.memory_space<vmem>>, vector<8x64xf32>
    tpu.vector_store %arg8[%c0_90, %c0_91], %174 {strides = array<i32>} : memref<8x64xf32, #tpu.memory_space<vmem>>, vector<8x64xf32>,
    %c0_92 = arith.constant 0 : index
    %c0_93 = arith.constant 0 : index
    %178 = vector.load %arg7[%c0_92, %c0_93] : memref<8x64xf32, #tpu.memory_space<vmem>>, vector<8x64xf32>
    tpu.vector_store %arg7[%c0_92, %c0_93], %176 {strides = array<i32>} : memref<8x64xf32, #tpu.memory_space<vmem>>, vector<8x64xf32>,
    %c32_94 = arith.constant 32 : index
    %c0_95 = arith.constant 0 : index
    %179 = vector.load %arg6[%c32_94, %c0_95] : memref<64x64xf32, #tpu.memory_space<vmem>>, vector<8x64xf32>
    tpu.vector_store %arg6[%c32_94, %c0_95], %176 {strides = array<i32>} : memref<64x64xf32, #tpu.memory_space<vmem>>, vector<8x64xf32>,
    %c0_96 = arith.constant 0 : index
    %c0_97 = arith.constant 0 : index
    %180 = vector.load %arg7[%c0_96, %c0_97] : memref<8x64xf32, #tpu.memory_space<vmem>>, vector<8x64xf32>
    %c40 = arith.constant 40 : index
    %c0_98 = arith.constant 0 : index
    %181 = vector.load %arg5[%c40, %c0_98] : memref<64x256xf32, #tpu.memory_space<vmem>>, vector<8x256xf32>
    %cst_99 = arith.constant dense<0.000000e+00> : vector<8x256xf32>
    %182 = tpu.matmul %180, %29, %cst_99 {dimension_numbers = #tpu.dot_dimension_numbers<[1], [0], [0], [1], [0, 0, 1, 1], [], []>} : vector<8x64xf32>, vector<64x256xf32>, vector<8x256xf32> -> vector<8x256xf32>
    %183 = arith.addf %181, %182 : vector<8x256xf32>
    %184 = vector.extract_strided_slice %183 {offsets = [0, 0], sizes = [8, 128], strides = [1, 1]} : vector<8x256xf32> to vector<8x128xf32>
    %185 = vector.extract_strided_slice %183 {offsets = [0, 128], sizes = [8, 128], strides = [1, 1]} : vector<8x256xf32> to vector<8x128xf32>
    %186 = arith.negf %184 : vector<8x128xf32>
    %187 = math.exp %186 : vector<8x128xf32>
    %cst_100 = arith.constant 1.000000e+00 : f32
    %188 = vector.broadcast %cst_100 : f32 to vector<8x128xf32>
    %189 = arith.addf %188, %187 : vector<8x128xf32>
    %190 = arith.divf %188, %189 : vector<8x128xf32>
    %191 = vector.extract_strided_slice %190 {offsets = [0, 0], sizes = [8, 64], strides = [1, 1]} : vector<8x128xf32> to vector<8x64xf32>
    %192 = vector.extract_strided_slice %190 {offsets = [0, 64], sizes = [8, 64], strides = [1, 1]} : vector<8x128xf32> to vector<8x64xf32>
    %193 = math.tanh %185 : vector<8x128xf32>
    %194 = vector.extract_strided_slice %193 {offsets = [0, 0], sizes = [8, 64], strides = [1, 1]} : vector<8x128xf32> to vector<8x64xf32>
    %195 = arith.negf %185 : vector<8x128xf32>
    %196 = math.exp %195 : vector<8x128xf32>
    %cst_101 = arith.constant 1.000000e+00 : f32
    %197 = vector.broadcast %cst_101 : f32 to vector<8x128xf32>
    %198 = arith.addf %197, %196 : vector<8x128xf32>
    %199 = arith.divf %197, %198 : vector<8x128xf32>
    %200 = vector.extract_strided_slice %199 {offsets = [0, 64], sizes = [8, 64], strides = [1, 1]} : vector<8x128xf32> to vector<8x64xf32>
    %c0_102 = arith.constant 0 : index
    %c0_103 = arith.constant 0 : index
    %201 = vector.load %arg8[%c0_102, %c0_103] : memref<8x64xf32, #tpu.memory_space<vmem>>, vector<8x64xf32>
    %202 = arith.mulf %192, %201 : vector<8x64xf32>
    %203 = arith.mulf %191, %194 : vector<8x64xf32>
    %204 = arith.addf %202, %203 : vector<8x64xf32>
    %205 = math.tanh %204 : vector<8x64xf32>
    %206 = arith.mulf %200, %205 : vector<8x64xf32>
    %c0_104 = arith.constant 0 : index
    %c0_105 = arith.constant 0 : index
    %207 = vector.load %arg8[%c0_104, %c0_105] : memref<8x64xf32, #tpu.memory_space<vmem>>, vector<8x64xf32>
    tpu.vector_store %arg8[%c0_104, %c0_105], %204 {strides = array<i32>} : memref<8x64xf32, #tpu.memory_space<vmem>>, vector<8x64xf32>,
    %c0_106 = arith.constant 0 : index
    %c0_107 = arith.constant 0 : index
    %208 = vector.load %arg7[%c0_106, %c0_107] : memref<8x64xf32, #tpu.memory_space<vmem>>, vector<8x64xf32>
    tpu.vector_store %arg7[%c0_106, %c0_107], %206 {strides = array<i32>} : memref<8x64xf32, #tpu.memory_space<vmem>>, vector<8x64xf32>,
    %c40_108 = arith.constant 40 : index
    %c0_109 = arith.constant 0 : index
    %209 = vector.load %arg6[%c40_108, %c0_109] : memref<64x64xf32, #tpu.memory_space<vmem>>, vector<8x64xf32>
    tpu.vector_store %arg6[%c40_108, %c0_109], %206 {strides = array<i32>} : memref<64x64xf32, #tpu.memory_space<vmem>>, vector<8x64xf32>,
    %c0_110 = arith.constant 0 : index
    %c0_111 = arith.constant 0 : index
    %210 = vector.load %arg7[%c0_110, %c0_111] : memref<8x64xf32, #tpu.memory_space<vmem>>, vector<8x64xf32>
    %c48 = arith.constant 48 : index
    %c0_112 = arith.constant 0 : index
    %211 = vector.load %arg5[%c48, %c0_112] : memref<64x256xf32, #tpu.memory_space<vmem>>, vector<8x256xf32>
    %cst_113 = arith.constant dense<0.000000e+00> : vector<8x256xf32>
    %212 = tpu.matmul %210, %29, %cst_113 {dimension_numbers = #tpu.dot_dimension_numbers<[1], [0], [0], [1], [0, 0, 1, 1], [], []>} : vector<8x64xf32>, vector<64x256xf32>, vector<8x256xf32> -> vector<8x256xf32>
    %213 = arith.addf %211, %212 : vector<8x256xf32>
    %214 = vector.extract_strided_slice %213 {offsets = [0, 0], sizes = [8, 128], strides = [1, 1]} : vector<8x256xf32> to vector<8x128xf32>
    %215 = vector.extract_strided_slice %213 {offsets = [0, 128], sizes = [8, 128], strides = [1, 1]} : vector<8x256xf32> to vector<8x128xf32>
    %216 = arith.negf %214 : vector<8x128xf32>
    %217 = math.exp %216 : vector<8x128xf32>
    %cst_114 = arith.constant 1.000000e+00 : f32
    %218 = vector.broadcast %cst_114 : f32 to vector<8x128xf32>
    %219 = arith.addf %218, %217 : vector<8x128xf32>
    %220 = arith.divf %218, %219 : vector<8x128xf32>
    %221 = vector.extract_strided_slice %220 {offsets = [0, 0], sizes = [8, 64], strides = [1, 1]} : vector<8x128xf32> to vector<8x64xf32>
    %222 = vector.extract_strided_slice %220 {offsets = [0, 64], sizes = [8, 64], strides = [1, 1]} : vector<8x128xf32> to vector<8x64xf32>
    %223 = math.tanh %215 : vector<8x128xf32>
    %224 = vector.extract_strided_slice %223 {offsets = [0, 0], sizes = [8, 64], strides = [1, 1]} : vector<8x128xf32> to vector<8x64xf32>
    %225 = arith.negf %215 : vector<8x128xf32>
    %226 = math.exp %225 : vector<8x128xf32>
    %cst_115 = arith.constant 1.000000e+00 : f32
    %227 = vector.broadcast %cst_115 : f32 to vector<8x128xf32>
    %228 = arith.addf %227, %226 : vector<8x128xf32>
    %229 = arith.divf %227, %228 : vector<8x128xf32>
    %230 = vector.extract_strided_slice %229 {offsets = [0, 64], sizes = [8, 64], strides = [1, 1]} : vector<8x128xf32> to vector<8x64xf32>
    %c0_116 = arith.constant 0 : index
    %c0_117 = arith.constant 0 : index
    %231 = vector.load %arg8[%c0_116, %c0_117] : memref<8x64xf32, #tpu.memory_space<vmem>>, vector<8x64xf32>
    %232 = arith.mulf %222, %231 : vector<8x64xf32>
    %233 = arith.mulf %221, %224 : vector<8x64xf32>
    %234 = arith.addf %232, %233 : vector<8x64xf32>
    %235 = math.tanh %234 : vector<8x64xf32>
    %236 = arith.mulf %230, %235 : vector<8x64xf32>
    %c0_118 = arith.constant 0 : index
    %c0_119 = arith.constant 0 : index
    %237 = vector.load %arg8[%c0_118, %c0_119] : memref<8x64xf32, #tpu.memory_space<vmem>>, vector<8x64xf32>
    tpu.vector_store %arg8[%c0_118, %c0_119], %234 {strides = array<i32>} : memref<8x64xf32, #tpu.memory_space<vmem>>, vector<8x64xf32>,
    %c0_120 = arith.constant 0 : index
    %c0_121 = arith.constant 0 : index
    %238 = vector.load %arg7[%c0_120, %c0_121] : memref<8x64xf32, #tpu.memory_space<vmem>>, vector<8x64xf32>
    tpu.vector_store %arg7[%c0_120, %c0_121], %236 {strides = array<i32>} : memref<8x64xf32, #tpu.memory_space<vmem>>, vector<8x64xf32>,
    %c48_122 = arith.constant 48 : index
    %c0_123 = arith.constant 0 : index
    %239 = vector.load %arg6[%c48_122, %c0_123] : memref<64x64xf32, #tpu.memory_space<vmem>>, vector<8x64xf32>
    tpu.vector_store %arg6[%c48_122, %c0_123], %236 {strides = array<i32>} : memref<64x64xf32, #tpu.memory_space<vmem>>, vector<8x64xf32>,
    %c0_124 = arith.constant 0 : index
    %c0_125 = arith.constant 0 : index
    %240 = vector.load %arg7[%c0_124, %c0_125] : memref<8x64xf32, #tpu.memory_space<vmem>>, vector<8x64xf32>
    %c56 = arith.constant 56 : index
    %c0_126 = arith.constant 0 : index
    %241 = vector.load %arg5[%c56, %c0_126] : memref<64x256xf32, #tpu.memory_space<vmem>>, vector<8x256xf32>
    %cst_127 = arith.constant dense<0.000000e+00> : vector<8x256xf32>
    %242 = tpu.matmul %240, %29, %cst_127 {dimension_numbers = #tpu.dot_dimension_numbers<[1], [0], [0], [1], [0, 0, 1, 1], [], []>} : vector<8x64xf32>, vector<64x256xf32>, vector<8x256xf32> -> vector<8x256xf32>
    %243 = arith.addf %241, %242 : vector<8x256xf32>
    %244 = vector.extract_strided_slice %243 {offsets = [0, 0], sizes = [8, 128], strides = [1, 1]} : vector<8x256xf32> to vector<8x128xf32>
    %245 = vector.extract_strided_slice %243 {offsets = [0, 128], sizes = [8, 128], strides = [1, 1]} : vector<8x256xf32> to vector<8x128xf32>
    %246 = arith.negf %244 : vector<8x128xf32>
    %247 = math.exp %246 : vector<8x128xf32>
    %cst_128 = arith.constant 1.000000e+00 : f32
    %248 = vector.broadcast %cst_128 : f32 to vector<8x128xf32>
    %249 = arith.addf %248, %247 : vector<8x128xf32>
    %250 = arith.divf %248, %249 : vector<8x128xf32>
    %251 = vector.extract_strided_slice %250 {offsets = [0, 0], sizes = [8, 64], strides = [1, 1]} : vector<8x128xf32> to vector<8x64xf32>
    %252 = vector.extract_strided_slice %250 {offsets = [0, 64], sizes = [8, 64], strides = [1, 1]} : vector<8x128xf32> to vector<8x64xf32>
    %253 = math.tanh %245 : vector<8x128xf32>
    %254 = vector.extract_strided_slice %253 {offsets = [0, 0], sizes = [8, 64], strides = [1, 1]} : vector<8x128xf32> to vector<8x64xf32>
    %255 = arith.negf %245 : vector<8x128xf32>
    %256 = math.exp %255 : vector<8x128xf32>
    %cst_129 = arith.constant 1.000000e+00 : f32
    %257 = vector.broadcast %cst_129 : f32 to vector<8x128xf32>
    %258 = arith.addf %257, %256 : vector<8x128xf32>
    %259 = arith.divf %257, %258 : vector<8x128xf32>
    %260 = vector.extract_strided_slice %259 {offsets = [0, 64], sizes = [8, 64], strides = [1, 1]} : vector<8x128xf32> to vector<8x64xf32>
    %c0_130 = arith.constant 0 : index
    %c0_131 = arith.constant 0 : index
    %261 = vector.load %arg8[%c0_130, %c0_131] : memref<8x64xf32, #tpu.memory_space<vmem>>, vector<8x64xf32>
    %262 = arith.mulf %252, %261 : vector<8x64xf32>
    %263 = arith.mulf %251, %254 : vector<8x64xf32>
    %264 = arith.addf %262, %263 : vector<8x64xf32>
    %265 = math.tanh %264 : vector<8x64xf32>
    %266 = arith.mulf %260, %265 : vector<8x64xf32>
    %c0_132 = arith.constant 0 : index
    %c0_133 = arith.constant 0 : index
    %267 = vector.load %arg8[%c0_132, %c0_133] : memref<8x64xf32, #tpu.memory_space<vmem>>, vector<8x64xf32>
    tpu.vector_store %arg8[%c0_132, %c0_133], %264 {strides = array<i32>} : memref<8x64xf32, #tpu.memory_space<vmem>>, vector<8x64xf32>,
    %c0_134 = arith.constant 0 : index
    %c0_135 = arith.constant 0 : index
    %268 = vector.load %arg7[%c0_134, %c0_135] : memref<8x64xf32, #tpu.memory_space<vmem>>, vector<8x64xf32>
    tpu.vector_store %arg7[%c0_134, %c0_135], %266 {strides = array<i32>} : memref<8x64xf32, #tpu.memory_space<vmem>>, vector<8x64xf32>,
    %c56_136 = arith.constant 56 : index
    %c0_137 = arith.constant 0 : index
    %269 = vector.load %arg6[%c56_136, %c0_137] : memref<64x64xf32, #tpu.memory_space<vmem>>, vector<8x64xf32>
    tpu.vector_store %arg6[%c56_136, %c0_137], %266 {strides = array<i32>} : memref<64x64xf32, #tpu.memory_space<vmem>>, vector<8x64xf32>,
    %c0_138 = arith.constant 0 : index
    %c0_139 = arith.constant 0 : index
    %270 = vector.load %arg6[%c0_138, %c0_139] : memref<64x64xf32, #tpu.memory_space<vmem>>, vector<64x64xf32>
    %c136 = arith.constant 136 : index
    %c0_140 = arith.constant 0 : index
    %271 = vector.load %arg3[%c136, %c0_140] : memref<208x256xf32, #tpu.memory_space<vmem>>, vector<64x256xf32>
    %cst_141 = arith.constant dense<0.000000e+00> : vector<64x256xf32>
    %272 = tpu.matmul %270, %271, %cst_141 {dimension_numbers = #tpu.dot_dimension_numbers<[1], [0], [0], [1], [0, 0, 1, 1], [], []>} : vector<64x64xf32>, vector<64x256xf32>, vector<64x256xf32> -> vector<64x256xf32>
    %c200 = arith.constant 200 : index
    %c0_142 = arith.constant 0 : index
    %273 = vector.load %arg3[%c200, %c0_142] : memref<208x256xf32, #tpu.memory_space<vmem>>, vector<1x256xf32>
    %274 = vector.broadcast %273 : vector<1x256xf32> to vector<64x256xf32>
    %275 = arith.addf %272, %274 : vector<64x256xf32>
    %c0_143 = arith.constant 0 : index
    %c0_144 = arith.constant 0 : index
    %c0_145 = arith.constant 0 : index
    %276 = vector.load %arg4[%c0_143, %c0_144, %c0_145] : memref<1x64x256xf32, #tpu.memory_space<vmem>>, vector<1x64x256xf32>
    %277 = vector.shape_cast %276 : vector<1x64x256xf32> to vector<64x256xf32>
    %278 = vector.shape_cast %275 : vector<64x256xf32> to vector<1x64x256xf32>
    tpu.vector_store %arg4[%c0_143, %c0_144, %c0_145], %278 {strides = array<i32>} : memref<1x64x256xf32, #tpu.memory_space<vmem>>, vector<1x64x256xf32>,
    return
  }
  func.func @transform_0(%arg0: i32) -> (i32, i32, i32) {
    %c0_i32 = arith.constant 0 : i32
    %c0_i32_0 = arith.constant 0 : i32
    %c0_i32_1 = arith.constant 0 : i32
    return %arg0, %c0_i32, %c0_i32_0 : i32, i32, i32
  }
  func.func @transform_1(%arg0: i32) -> (i32, i32) {
    %c0_i32 = arith.constant 0 : i32
    %c0_i32_0 = arith.constant 0 : i32
    %c0_i32_1 = arith.constant 0 : i32
    return %c0_i32, %c0_i32_0 : i32, i32
  }
  func.func @transform_2(%arg0: i32) -> (i32, i32) {
    %c0_i32 = arith.constant 0 : i32
    %c0_i32_0 = arith.constant 0 : i32
    %c0_i32_1 = arith.constant 0 : i32
    return %c0_i32, %c0_i32_0 : i32, i32
  }
  func.func @transform_3(%arg0: i32) -> (i32, i32, i32) {
    %c0_i32 = arith.constant 0 : i32
    %c0_i32_0 = arith.constant 0 : i32
    %c0_i32_1 = arith.constant 0 : i32
    return %arg0, %c0_i32, %c0_i32_0 : i32, i32, i32
  }
}

</mosaic_0001>

<llo_original>
// kernel: policy_forward.1
$region0: #{policy_forward.1}
  #allocation0 [shape = 'u32[]', space=smem, size = 0x4, offset = 0x4, fixed_abs, tag = 'smem constant byte address 0x4 - core index']
  #allocation1 [shape = 'u32[72,128]{1,0:T(1,128)}', space=vmem, size = 0x9000, scoped, tag = 'internal scratch']
  #allocation2 [shape = 'f32[64,256]{1,0:T(8,128)}', space=vmem, size = 0x10000, scoped, tag = 'scratch operand']
  #allocation3 [shape = 'f32[64,64]{1,0:T(8,128)}', space=vmem, size = 0x8000, scoped, tag = 'scratch operand']
  #allocation4 [shape = 'f32[8,64]{1,0:T(8,128)}', space=vmem, size = 0x1000, scoped, tag = 'scratch operand']
  #allocation5 [shape = 'f32[8,64]{1,0:T(8,128)}', space=vmem, size = 0x1000, scoped, tag = 'scratch operand']
  %s0 = inlined_call_operand.vmem [shape: f32[1,64,32], index: 0, kind: input, shape index: {}]
  %s1 = inlined_call_operand.vmem [shape: f32[184,64], index: 1, kind: input, shape index: {}]
  %s2 = inlined_call_operand.vmem [shape: f32[208,256], index: 2, kind: input, shape index: {}]
  %s3 = inlined_call_operand.vmem [shape: f32[1,64,256], index: 3, kind: output, shape index: {}]
  %s4 = sld [smem:[#allocation0]]
  $region22: #{policy_forward.1} parent=0
    _
  %s6 = ssub.s32 1, %s4
  %s7 = scalar_select 0, %s6, %s4
  // Predicated region
  $region2: #{policy_forward.1} parent=0 // pred_check
    _
  $region3: #{policy_forward.1} parent=0 // pred_check_branch
    %9 = sbr.rel (0) target = $region5
  $region4: #{policy_forward.1} parent=0 // pred_region
    _
  $region5: #{policy_forward.1} parent=0 // pred_fallthru
    _
  // Predicated region
  $region6: #{policy_forward.1} parent=0 // pred_check
    _
  $region7: #{policy_forward.1} parent=0 // pred_check_branch
    %11 = sbr.rel (0) target = $region9
  $region8: #{policy_forward.1} parent=0 // pred_region
    _
  $region9: #{policy_forward.1} parent=0 // pred_fallthru
    _
  // Predicated region
  $region10: #{policy_forward.1} parent=0 // pred_check
    _
  $region11: #{policy_forward.1} parent=0 // pred_check_branch
    %13 = sbr.rel (0) target = $region13
  $region12: #{policy_forward.1} parent=0 // pred_region
    _
  $region13: #{policy_forward.1} parent=0 // pred_fallthru
    _
  %v14 = vld [vmem:[%s0] sm:$0xff]
  %v15 = vld [vmem:[%s0 + $0x8] sm:$0xff]
  %v16 = vld [vmem:[%s0 + $0x10] sm:$0xff]
  %v17 = vld [vmem:[%s0 + $0x18] sm:$0xff]
  %v18 = vld [vmem:[%s0 + $0x20] sm:$0xff]
  %v19 = vld [vmem:[%s0 + $0x28] sm:$0xff]
  %v20 = vld [vmem:[%s0 + $0x30] sm:$0xff]
  %v21 = vld [vmem:[%s0 + $0x38] sm:$0xff]
  %v22 = vld [vmem:[%s1] sm:$0xff]
  %v23 = vld [vmem:[%s1 + $0x8] sm:$0xff]
  %v24 = vld [vmem:[%s1 + $0x10] sm:$0xff]
  %v25 = vld [vmem:[%s1 + $0x18] sm:$0xff]
  %v26 = vld [vmem:[%s1 + $0xa0] sm:$0x1]
  %v27 = vperm.slane %v26, 0
  %vm28 = vcmask 261120
  %v30 = vsel %vm28, %v14, 0
  %v33 = vsel %vm28, %v15, 0
  %v36 = vsel %vm28, %v16, 0
  %v39 = vsel %vm28, %v17, 0
  %v42 = vsel %vm28, %v18, 0
  %v45 = vsel %vm28, %v19, 0
  %v48 = vsel %vm28, %v20, 0
  %v51 = vsel %vm28, %v21, 0
  %53 = vmatpush.msra.mxu0 0.0
  %54 = vmatpush.msra.mxu0 0.0
  %55 = vmatpush.msra.mxu0 0.0
  %56 = vmatpush.msra.mxu0 0.0
  %57 = vmatpush.msra.mxu0 0.0
  %58 = vmatpush.msra.mxu0 0.0
  %59 = vmatpush.msra.mxu0 0.0
  %60 = vmatpush.msra.mxu0 0.0
  %61 = vmatpush.msra.mxu0 0.0
  %62 = vmatpush.msra.mxu0 0.0
  %63 = vmatpush.msra.mxu0 0.0
  %64 = vmatpush.msra.mxu0 0.0
  %65 = vmatpush.msra.mxu0 %v25
  %66 = vmatpush.msra.mxu0 %v24
  %67 = vmatpush.msra.mxu0 %v23
  %68 = vmatpush.msra.mxu0 %v22
  %69 = vmatmul.f32.gmra.mxu0 %v30
  %v70 = vpop.f32.mrf.mxu0
  %v71 = vadd.f32 %v27, %v70
  %72 = vmatmul.f32.gmra.mxu0 %v33
  %v73 = vpop.f32.mrf.mxu0
  %v74 = vadd.f32 %v27, %v73
  %75 = vmatmul.f32.gmra.mxu0 %v36
  %v76 = vpop.f32.mrf.mxu0
  %v77 = vadd.f32 %v27, %v76
  %78 = vmatmul.f32.gmra.mxu0 %v39
  %v79 = vpop.f32.mrf.mxu0
  %v80 = vadd.f32 %v27, %v79
  %81 = vmatmul.f32.gmra.mxu0 %v42
  %v82 = vpop.f32.mrf.mxu0
  %v83 = vadd.f32 %v27, %v82
  %84 = vmatmul.f32.gmra.mxu0 %v45
  %v85 = vpop.f32.mrf.mxu0
  %v86 = vadd.f32 %v27, %v85
  %87 = vmatmul.f32.gmra.mxu0 %v48
  %v88 = vpop.f32.mrf.mxu0
  %v89 = vadd.f32 %v27, %v88
  %90 = vmatmul.f32.gmra.mxu0 %v51
  %v91 = vpop.f32.mrf.mxu0
  %v92 = vadd.f32 %v27, %v91
  %93 = vdwg.mxu0
  %v94 = vtanh.pop %v71
  %v95 = vtanh.pop %v74
  %v96 = vtanh.pop %v77
  %v97 = vtanh.pop %v80
  %v98 = vtanh.pop %v83
  %v99 = vtanh.pop %v86
  %v100 = vtanh.pop %v89
  %v101 = vtanh.pop %v92
  %v102 = vld [vmem:[%s1 + $0x20] sm:$0xff]
  %v103 = vld [vmem:[%s1 + $0x28] sm:$0xff]
  %v104 = vld [vmem:[%s1 + $0x30] sm:$0xff]
  %v105 = vld [vmem:[%s1 + $0x38] sm:$0xff]
  %v106 = vld [vmem:[%s1 + $0x40] sm:$0xff]
  %v107 = vld [vmem:[%s1 + $0x48] sm:$0xff]
  %v108 = vld [vmem:[%s1 + $0x50] sm:$0xff]
  %v109 = vld [vmem:[%s1 + $0x58] sm:$0xff]
  %v110 = vld [vmem:[%s1 + $0xa8] sm:$0x1]
  %v111 = vperm.slane %v110, 0
  %vm112 = vcmask 523264
  %v114 = vsel %vm112, %v94, 0
  %v117 = vsel %vm112, %v95, 0
  %v120 = vsel %vm112, %v96, 0
  %v123 = vsel %vm112, %v97, 0
  %v126 = vsel %vm112, %v98, 0
  %v129 = vsel %vm112, %v99, 0
  %v132 = vsel %vm112, %v100, 0
  %v135 = vsel %vm112, %v101, 0
  %137 = vmatpush.msra.mxu0 0.0
  %138 = vmatpush.msra.mxu0 0.0
  %139 = vmatpush.msra.mxu0 0.0
  %140 = vmatpush.msra.mxu0 0.0
  %141 = vmatpush.msra.mxu0 0.0
  %142 = vmatpush.msra.mxu0 0.0
  %143 = vmatpush.msra.mxu0 0.0
  %144 = vmatpush.msra.mxu0 0.0
  %145 = vmatpush.msra.mxu0 %v109
  %146 = vmatpush.msra.mxu0 %v108
  %147 = vmatpush.msra.mxu0 %v107
  %148 = vmatpush.msra.mxu0 %v106
  %149 = vmatpush.msra.mxu0 %v105
  %150 = vmatpush.msra.mxu0 %v104
  %151 = vmatpush.msra.mxu0 %v103
  %152 = vmatpush.msra.mxu0 %v102
  %153 = vmatmul.f32.gmra.mxu0 %v114
  %v154 = vpop.f32.mrf.mxu0
  %v155 = vadd.f32 %v111, %v154
  %156 = vmatmul.f32.gmra.mxu0 %v117
  %v157 = vpop.f32.mrf.mxu0
  %v158 = vadd.f32 %v111, %v157
  %159 = vmatmul.f32.gmra.mxu0 %v120
  %v160 = vpop.f32.mrf.mxu0
  %v161 = vadd.f32 %v111, %v160
  %162 = vmatmul.f32.gmra.mxu0 %v123
  %v163 = vpop.f32.mrf.mxu0
  %v164 = vadd.f32 %v111, %v163
  %165 = vmatmul.f32.gmra.mxu0 %v126
  %v166 = vpop.f32.mrf.mxu0
  %v167 = vadd.f32 %v111, %v166
  %168 = vmatmul.f32.gmra.mxu0 %v129
  %v169 = vpop.f32.mrf.mxu0
  %v170 = vadd.f32 %v111, %v169
  %171 = vmatmul.f32.gmra.mxu0 %v132
  %v172 = vpop.f32.mrf.mxu0
  %v173 = vadd.f32 %v111, %v172
  %174 = vmatmul.f32.gmra.mxu0 %v135
  %v175 = vpop.f32.mrf.mxu0
  %v176 = vadd.f32 %v111, %v175
  %177 = vdwg.mxu0
  %v178 = vtanh.pop %v155
  %v179 = vtanh.pop %v158
  %v180 = vtanh.pop %v161
  %v181 = vtanh.pop %v164
  %v182 = vtanh.pop %v167
  %v183 = vtanh.pop %v170
  %v184 = vtanh.pop %v173
  %v185 = vtanh.pop %v176
  %v186 = vld [vmem:[%s1 + $0x60] sm:$0xff]
  %v187 = vld [vmem:[%s1 + $0x68] sm:$0xff]
  %v188 = vld [vmem:[%s1 + $0x70] sm:$0xff]
  %v189 = vld [vmem:[%s1 + $0x78] sm:$0xff]
  %v190 = vld [vmem:[%s1 + $0x80] sm:$0xff]
  %v191 = vld [vmem:[%s1 + $0x88] sm:$0xff]
  %v192 = vld [vmem:[%s1 + $0x90] sm:$0xff]
  %v193 = vld [vmem:[%s1 + $0x98] sm:$0xff]
  %v194 = vld [vmem:[%s1 + $0xb0] sm:$0x1]
  %v195 = vperm.slane %v194, 0
  %v197 = vsel %vm112, %v178, 0
  %v200 = vsel %vm112, %v179, 0
  %v203 = vsel %vm112, %v180, 0
  %v206 = vsel %vm112, %v181, 0
  %v209 = vsel %vm112, %v182, 0
  %v212 = vsel %vm112, %v183, 0
  %v215 = vsel %vm112, %v184, 0
  %v218 = vsel %vm112, %v185, 0
  %220 = vmatpush.msra.mxu0 0.0
  %221 = vmatpush.msra.mxu0 0.0
  %222 = vmatpush.msra.mxu0 0.0
  %223 = vmatpush.msra.mxu0 0.0
  %224 = vmatpush.msra.mxu0 0.0
  %225 = vmatpush.msra.mxu0 0.0
  %226 = vmatpush.msra.mxu0 0.0
  %227 = vmatpush.msra.mxu0 0.0
  %228 = vmatpush.msra.mxu0 %v193
  %229 = vmatpush.msra.mxu0 %v192
  %230 = vmatpush.msra.mxu0 %v191
  %231 = vmatpush.msra.mxu0 %v190
  %232 = vmatpush.msra.mxu0 %v189
  %233 = vmatpush.msra.mxu0 %v188
  %234 = vmatpush.msra.mxu0 %v187
  %235 = vmatpush.msra.mxu0 %v186
  %236 = vmatmul.f32.gmra.mxu0 %v197
  %v237 = vpop.f32.mrf.mxu0
  %v238 = vadd.f32 %v195, %v237
  %239 = vmatmul.f32.gmra.mxu0 %v200
  %v240 = vpop.f32.mrf.mxu0
  %v241 = vadd.f32 %v195, %v240
  %242 = vmatmul.f32.gmra.mxu0 %v203
  %v243 = vpop.f32.mrf.mxu0
  %v244 = vadd.f32 %v195, %v243
  %245 = vmatmul.f32.gmra.mxu0 %v206
  %v246 = vpop.f32.mrf.mxu0
  %v247 = vadd.f32 %v195, %v246
  %248 = vmatmul.f32.gmra.mxu0 %v209
  %v249 = vpop.f32.mrf.mxu0
  %v250 = vadd.f32 %v195, %v249
  %251 = vmatmul.f32.gmra.mxu0 %v212
  %v252 = vpop.f32.mrf.mxu0
  %v253 = vadd.f32 %v195, %v252
  %254 = vmatmul.f32.gmra.mxu0 %v215
  %v255 = vpop.f32.mrf.mxu0
  %v256 = vadd.f32 %v195, %v255
  %257 = vmatmul.f32.gmra.mxu0 %v218
  %v258 = vpop.f32.mrf.mxu0
  %v259 = vadd.f32 %v195, %v258
  %260 = vdwg.mxu0
  %v261 = vld [vmem:[%s2] sm:$0xff]
  %v262 = vld [vmem:[%s2 + $0x8] sm:$0xff]
  %v263 = vld [vmem:[%s2 + $0x10] sm:$0xff]
  %v264 = vld [vmem:[%s2 + $0x18] sm:$0xff]
  %v265 = vld [vmem:[%s2 + $0x20] sm:$0xff]
  %v266 = vld [vmem:[%s2 + $0x28] sm:$0xff]
  %v267 = vld [vmem:[%s2 + $0x30] sm:$0xff]
  %v268 = vld [vmem:[%s2 + $0x38] sm:$0xff]
  %v269 = vld [vmem:[%s2 + $0x40] sm:$0xff]
  %v270 = vld [vmem:[%s2 + $0x48] sm:$0xff]
  %v271 = vld [vmem:[%s2 + $0x50] sm:$0xff]
  %v272 = vld [vmem:[%s2 + $0x58] sm:$0xff]
  %v273 = vld [vmem:[%s2 + $0x60] sm:$0xff]
  %v274 = vld [vmem:[%s2 + $0x68] sm:$0xff]
  %v275 = vld [vmem:[%s2 + $0x70] sm:$0xff]
  %v276 = vld [vmem:[%s2 + $0x78] sm:$0xff]
  %s277 = scalar_lea.vmem %s2, 256
  %v278 = vld [vmem:[%s277] ss:$8 sm:$0x3]
  %v280 = vperm.slane %v278, 0
  %v281 = vperm.slane %v278, 1
  %v285 = vsel %vm112, %v238, 0
  %v288 = vsel %vm112, %v241, 0
  %v291 = vsel %vm112, %v244, 0
  %v294 = vsel %vm112, %v247, 0
  %v297 = vsel %vm112, %v250, 0
  %v300 = vsel %vm112, %v253, 0
  %v303 = vsel %vm112, %v256, 0
  %v306 = vsel %vm112, %v259, 0
  %308 = vmatpush.msra.mxu0 0.0
  %309 = vmatpush.msra.mxu0 0.0
  %310 = vmatpush.msra.mxu0 0.0
  %311 = vmatpush.msra.mxu0 0.0
  %312 = vmatpush.msra.mxu0 0.0
  %313 = vmatpush.msra.mxu0 0.0
  %314 = vmatpush.msra.mxu0 0.0
  %315 = vmatpush.msra.mxu0 0.0
  %316 = vmatpush.msra.mxu0 %v275
  %317 = vmatpush.msra.mxu0 %v273
  %318 = vmatpush.msra.mxu0 %v271
  %319 = vmatpush.msra.mxu0 %v269
  %320 = vmatpush.msra.mxu0 %v267
  %321 = vmatpush.msra.mxu0 %v265
  %322 = vmatpush.msra.mxu0 %v263
  %323 = vmatpush.msra.mxu0 %v261
  %324 = vmatmul.f32.gmra.mxu0 %v285
  %v325 = vpop.f32.mrf.mxu0
  %v326 = vadd.f32 %v280, %v325
  %327 = vmatmul.f32.gmra.mxu0 %v288
  %v328 = vpop.f32.mrf.mxu0
  %v329 = vadd.f32 %v280, %v328
  %330 = vmatmul.f32.gmra.mxu0 %v291
  %v331 = vpop.f32.mrf.mxu0
  %v332 = vadd.f32 %v280, %v331
  %333 = vmatmul.f32.gmra.mxu0 %v294
  %v334 = vpop.f32.mrf.mxu0
  %v335 = vadd.f32 %v280, %v334
  %336 = vmatmul.f32.gmra.mxu0 %v297
  %v337 = vpop.f32.mrf.mxu0
  %v338 = vadd.f32 %v280, %v337
  %339 = vmatmul.f32.gmra.mxu0 %v300
  %v340 = vpop.f32.mrf.mxu0
  %v341 = vadd.f32 %v280, %v340
  %342 = vmatmul.f32.gmra.mxu0 %v303
  %v343 = vpop.f32.mrf.mxu0
  %v344 = vadd.f32 %v280, %v343
  %345 = vmatmul.f32.gmra.mxu0 %v306
  %v346 = vpop.f32.mrf.mxu0
  %v347 = vadd.f32 %v280, %v346
  %348 = vdwg.mxu0
  %349 = vmatpush.msra.mxu0 0.0
  %350 = vmatpush.msra.mxu0 0.0
  %351 = vmatpush.msra.mxu0 0.0
  %352 = vmatpush.msra.mxu0 0.0
  %353 = vmatpush.msra.mxu0 0.0
  %354 = vmatpush.msra.mxu0 0.0
  %355 = vmatpush.msra.mxu0 0.0
  %356 = vmatpush.msra.mxu0 0.0
  %357 = vmatpush.msra.mxu0 %v276
  %358 = vmatpush.msra.mxu0 %v274
  %359 = vmatpush.msra.mxu0 %v272
  %360 = vmatpush.msra.mxu0 %v270
  %361 = vmatpush.msra.mxu0 %v268
  %362 = vmatpush.msra.mxu0 %v266
  %363 = vmatpush.msra.mxu0 %v264
  %364 = vmatpush.msra.mxu0 %v262
  %365 = vmatmul.f32.gmra.mxu0 %v285
  %v366 = vpop.f32.mrf.mxu0
  %v367 = vadd.f32 %v281, %v366
  %368 = vmatmul.f32.gmra.mxu0 %v288
  %v369 = vpop.f32.mrf.mxu0
  %v370 = vadd.f32 %v281, %v369
  %371 = vmatmul.f32.gmra.mxu0 %v291
  %v372 = vpop.f32.mrf.mxu0
  %v373 = vadd.f32 %v281, %v372
  %374 = vmatmul.f32.gmra.mxu0 %v294
  %v375 = vpop.f32.mrf.mxu0
  %v376 = vadd.f32 %v281, %v375
  %377 = vmatmul.f32.gmra.mxu0 %v297
  %v378 = vpop.f32.mrf.mxu0
  %v379 = vadd.f32 %v281, %v378
  %380 = vmatmul.f32.gmra.mxu0 %v300
  %v381 = vpop.f32.mrf.mxu0
  %v382 = vadd.f32 %v281, %v381
  %383 = vmatmul.f32.gmra.mxu0 %v303
  %v384 = vpop.f32.mrf.mxu0
  %v385 = vadd.f32 %v281, %v384
  %386 = vmatmul.f32.gmra.mxu0 %v306
  %v387 = vpop.f32.mrf.mxu0
  %v388 = vadd.f32 %v281, %v387
  %389 = vdwg.mxu0
  %390 = vst [vmem:[#allocation2] sm:$0xff] %v326
  %391 = vst [vmem:[#allocation2 + $0x8] sm:$0xff] %v367
  %392 = vst [vmem:[#allocation2 + $0x10] sm:$0xff] %v329
  %393 = vst [vmem:[#allocation2 + $0x18] sm:$0xff] %v370
  %394 = vst [vmem:[#allocation2 + $0x20] sm:$0xff] %v332
  %395 = vst [vmem:[#allocation2 + $0x28] sm:$0xff] %v373
  %396 = vst [vmem:[#allocation2 + $0x30] sm:$0xff] %v335
  %397 = vst [vmem:[#allocation2 + $0x38] sm:$0xff] %v376
  %398 = vst [vmem:[#allocation2 + $0x40] sm:$0xff] %v338
  %399 = vst [vmem:[#allocation2 + $0x48] sm:$0xff] %v379
  %400 = vst [vmem:[#allocation2 + $0x50] sm:$0xff] %v341
  %401 = vst [vmem:[#allocation2 + $0x58] sm:$0xff] %v382
  %402 = vst [vmem:[#allocation2 + $0x60] sm:$0xff] %v344
  %403 = vst [vmem:[#allocation2 + $0x68] sm:$0xff] %v385
  %404 = vst [vmem:[#allocation2 + $0x70] sm:$0xff] %v347
  %405 = vst [vmem:[#allocation2 + $0x78] sm:$0xff] %v388
  %406 = vst.msk [vmem:[#allocation4] sm:$0xff] %vm112, 0.0
  %407 = vst.msk [vmem:[#allocation5] sm:$0xff] %vm112, 0.0
  %v408 = vld [vmem:[%s2 + $0x80] sm:$0xff]
  %v409 = vld [vmem:[%s2 + $0x88] sm:$0xff]
  %v410 = vld [vmem:[%s2 + $0x90] sm:$0xff]
  %v411 = vld [vmem:[%s2 + $0x98] sm:$0xff]
  %v412 = vld [vmem:[%s2 + $0xa0] sm:$0xff]
  %v413 = vld [vmem:[%s2 + $0xa8] sm:$0xff]
  %v414 = vld [vmem:[%s2 + $0xb0] sm:$0xff]
  %v415 = vld [vmem:[%s2 + $0xb8] sm:$0xff]
  %v416 = vld [vmem:[%s2 + $0xc0] sm:$0xff]
  %v417 = vld [vmem:[%s2 + $0xc8] sm:$0xff]
  %v418 = vld [vmem:[%s2 + $0xd0] sm:$0xff]
  %v419 = vld [vmem:[%s2 + $0xd8] sm:$0xff]
  %v420 = vld [vmem:[%s2 + $0xe0] sm:$0xff]
  %v421 = vld [vmem:[%s2 + $0xe8] sm:$0xff]
  %v422 = vld [vmem:[%s2 + $0xf0] sm:$0xff]
  %v423 = vld [vmem:[%s2 + $0xf8] sm:$0xff]
  %v424 = vld [vmem:[#allocation4] sm:$0xff]
  %v425 = vld [vmem:[#allocation2] sm:$0xff]
  %v426 = vld [vmem:[#allocation2 + $0x8] sm:$0xff]
  %v428 = vsel %vm112, %v424, 0
  %430 = vmatpush.msra.mxu0 0.0
  %431 = vmatpush.msra.mxu0 0.0
  %432 = vmatpush.msra.mxu0 0.0
  %433 = vmatpush.msra.mxu0 0.0
  %434 = vmatpush.msra.mxu0 0.0
  %435 = vmatpush.msra.mxu0 0.0
  %436 = vmatpush.msra.mxu0 0.0
  %437 = vmatpush.msra.mxu0 0.0
  %438 = vmatpush.msra.mxu0 %v422
  %439 = vmatpush.msra.mxu0 %v420
  %440 = vmatpush.msra.mxu0 %v418
  %441 = vmatpush.msra.mxu0 %v416
  %442 = vmatpush.msra.mxu0 %v414
  %443 = vmatpush.msra.mxu0 %v412
  %444 = vmatpush.msra.mxu0 %v410
  %445 = vmatpush.msra.mxu0 %v408
  %446 = vmatmul.f32.gmra.mxu0 %v428
  %v447 = vpop.f32.mrf.mxu0
  %v448 = vadd.f32 0.0, %v447
  %449 = vdwg.mxu0
  %450 = vmatpush.msra.mxu0 0.0
  %451 = vmatpush.msra.mxu0 0.0
  %452 = vmatpush.msra.mxu0 0.0
  %453 = vmatpush.msra.mxu0 0.0
  %454 = vmatpush.msra.mxu0 0.0
  %455 = vmatpush.msra.mxu0 0.0
  %456 = vmatpush.msra.mxu0 0.0
  %457 = vmatpush.msra.mxu0 0.0
  %458 = vmatpush.msra.mxu0 %v423
  %459 = vmatpush.msra.mxu0 %v421
  %460 = vmatpush.msra.mxu0 %v419
  %461 = vmatpush.msra.mxu0 %v417
  %462 = vmatpush.msra.mxu0 %v415
  %463 = vmatpush.msra.mxu0 %v413
  %464 = vmatpush.msra.mxu0 %v411
  %465 = vmatpush.msra.mxu0 %v409
  %466 = vmatmul.f32.gmra.mxu0 %v428
  %v467 = vpop.f32.mrf.mxu0
  %v468 = vadd.f32 0.0, %v467
  %469 = vdwg.mxu0
  %v470 = vadd.f32 %v425, %v448
  %v471 = vadd.f32 %v426, %v468
  %v472 = vxor.u32 %v470, 2147483648
  %v473 = vmul.f32 %v472, 1.442695
  %v474 = vpow.pop %v473
  %v475 = vadd.f32 %v474, 1.0
  %v476 = vrcp.pop %v475
  %v477 = vmul.f32 %v475, %v476
  %v478 = vsub.f32 1.0, %v477
  %v479 = vmul.f32 %v476, %v478
  %v480 = vadd.f32 %v476, %v479
  %vm481 = vweird.f32 %v475
  %vm482 = vweird.f32 %v476
  %vm483 = vmor %vm481, %vm482
  %v484 = vsel %vm483, %v476, %v480
  %v485 = vand.u32 2147483647, %v475
  %vm486 = vcmp.eq.f32.partialorder %v485, 8.507059e+37
  %v487 = vand.u32 %v475, 2147483648
  %v488 = vor.u32 1.1754944e-38, %v487
  %v489 = vsel %vm486, %v488, %v484
  %v490 = vmul.f32 1.0, %v489
  %v491 = vtanh.pop %v471
  %v492 = vxor.u32 %v471, 2147483648
  %v493 = vmul.f32 %v492, 1.442695
  %v494 = vpow.pop %v493
  %v495 = vadd.f32 %v494, 1.0
  %v496 = vrcp.pop %v495
  %v497 = vmul.f32 %v495, %v496
  %v498 = vsub.f32 1.0, %v497
  %v499 = vmul.f32 %v496, %v498
  %v500 = vadd.f32 %v496, %v499
  %vm501 = vweird.f32 %v495
  %vm502 = vweird.f32 %v496
  %vm503 = vmor %vm501, %vm502
  %v504 = vsel %vm503, %v496, %v500
  %v505 = vand.u32 2147483647, %v495
  %vm506 = vcmp.eq.f32.partialorder %v505, 8.507059e+37
  %v507 = vand.u32 %v495, 2147483648
  %v508 = vor.u32 1.1754944e-38, %v507
  %v509 = vsel %vm506, %v508, %v504
  %v510 = vmul.f32 1.0, %v509
  %v511 = vld [vmem:[#allocation5] sm:$0xff]
  %513 = vrot.lane.b32.xlu0 %v511, 64
  %v514 = vpop.permute.xlu0 %513
  %v516 = vmul.f32 %v490, %v514
  %v517 = vmul.f32 %v490, %v491
  %519 = vrot.lane.b32.xlu0 %v517, 64
  %v520 = vpop.permute.xlu0 %519
  %v522 = vadd.f32 %v516, %v520
  %v523 = vtanh.pop %v522
  %v524 = vmul.f32 %v510, %v523
  %526 = vrot.lane.b32.xlu0 %v522, 64
  %v527 = vpop.permute.xlu0 %526
  %529 = vst.msk [vmem:[#allocation5] sm:$0xff] %vm112, %v527
  %531 = vrot.lane.b32.xlu0 %v524, 64
  %v532 = vpop.permute.xlu0 %531
  %534 = vst.msk [vmem:[#allocation4] sm:$0xff] %vm112, %v532
  %535 = vst.msk [vmem:[#allocation3] sm:$0xff] %vm112, %v532
  %v536 = vld [vmem:[#allocation4] sm:$0xff]
  %v537 = vld [vmem:[#allocation2 + $0x10] sm:$0xff]
  %v538 = vld [vmem:[#allocation2 + $0x18] sm:$0xff]
  %v540 = vsel %vm112, %v536, 0
  %542 = vmatpush.msra.mxu0 0.0
  %543 = vmatpush.msra.mxu0 0.0
  %544 = vmatpush.msra.mxu0 0.0
  %545 = vmatpush.msra.mxu0 0.0
  %546 = vmatpush.msra.mxu0 0.0
  %547 = vmatpush.msra.mxu0 0.0
  %548 = vmatpush.msra.mxu0 0.0
  %549 = vmatpush.msra.mxu0 0.0
  %550 = vmatpush.msra.mxu0 %v422
  %551 = vmatpush.msra.mxu0 %v420
  %552 = vmatpush.msra.mxu0 %v418
  %553 = vmatpush.msra.mxu0 %v416
  %554 = vmatpush.msra.mxu0 %v414
  %555 = vmatpush.msra.mxu0 %v412
  %556 = vmatpush.msra.mxu0 %v410
  %557 = vmatpush.msra.mxu0 %v408
  %558 = vmatmul.f32.gmra.mxu0 %v540
  %v559 = vpop.f32.mrf.mxu0
  %v560 = vadd.f32 0.0, %v559
  %561 = vdwg.mxu0
  %562 = vmatpush.msra.mxu0 0.0
  %563 = vmatpush.msra.mxu0 0.0
  %564 = vmatpush.msra.mxu0 0.0
  %565 = vmatpush.msra.mxu0 0.0
  %566 = vmatpush.msra.mxu0 0.0
  %567 = vmatpush.msra.mxu0 0.0
  %568 = vmatpush.msra.mxu0 0.0
  %569 = vmatpush.msra.mxu0 0.0
  %570 = vmatpush.msra.mxu0 %v423
  %571 = vmatpush.msra.mxu0 %v421
  %572 = vmatpush.msra.mxu0 %v419
  %573 = vmatpush.msra.mxu0 %v417
  %574 = vmatpush.msra.mxu0 %v415
  %575 = vmatpush.msra.mxu0 %v413
  %576 = vmatpush.msra.mxu0 %v411
  %577 = vmatpush.msra.mxu0 %v409
  %578 = vmatmul.f32.gmra.mxu0 %v540
  %v579 = vpop.f32.mrf.mxu0
  %v580 = vadd.f32 0.0, %v579
  %581 = vdwg.mxu0
  %v582 = vadd.f32 %v537, %v560
  %v583 = vadd.f32 %v538, %v580
  %v584 = vxor.u32 %v582, 2147483648
  %v585 = vmul.f32 %v584, 1.442695
  %v586 = vpow.pop %v585
  %v587 = vadd.f32 %v586, 1.0
  %v588 = vrcp.pop %v587
  %v589 = vmul.f32 %v587, %v588
  %v590 = vsub.f32 1.0, %v589
  %v591 = vmul.f32 %v588, %v590
  %v592 = vadd.f32 %v588, %v591
  %vm593 = vweird.f32 %v587
  %vm594 = vweird.f32 %v588
  %vm595 = vmor %vm593, %vm594
  %v596 = vsel %vm595, %v588, %v592
  %v597 = vand.u32 2147483647, %v587
  %vm598 = vcmp.eq.f32.partialorder %v597, 8.507059e+37
  %v599 = vand.u32 %v587, 2147483648
  %v600 = vor.u32 1.1754944e-38, %v599
  %v601 = vsel %vm598, %v600, %v596
  %v602 = vmul.f32 1.0, %v601
  %v603 = vtanh.pop %v583
  %v604 = vxor.u32 %v583, 2147483648
  %v605 = vmul.f32 %v604, 1.442695
  %v606 = vpow.pop %v605
  %v607 = vadd.f32 %v606, 1.0
  %v608 = vrcp.pop %v607
  %v609 = vmul.f32 %v607, %v608
  %v610 = vsub.f32 1.0, %v609
  %v611 = vmul.f32 %v608, %v610
  %v612 = vadd.f32 %v608, %v611
  %vm613 = vweird.f32 %v607
  %vm614 = vweird.f32 %v608
  %vm615 = vmor %vm613, %vm614
  %v616 = vsel %vm615, %v608, %v612
  %v617 = vand.u32 2147483647, %v607
  %vm618 = vcmp.eq.f32.partialorder %v617, 8.507059e+37
  %v619 = vand.u32 %v607, 2147483648
  %v620 = vor.u32 1.1754944e-38, %v619
  %v621 = vsel %vm618, %v620, %v616
  %v622 = vmul.f32 1.0, %v621
  %v623 = vld [vmem:[#allocation5] sm:$0xff]
  %625 = vrot.lane.b32.xlu0 %v623, 64
  %v626 = vpop.permute.xlu0 %625
  %v628 = vmul.f32 %v602, %v626
  %v629 = vmul.f32 %v602, %v603
  %631 = vrot.lane.b32.xlu0 %v629, 64
  %v632 = vpop.permute.xlu0 %631
  %v634 = vadd.f32 %v628, %v632
  %v635 = vtanh.pop %v634
  %v636 = vmul.f32 %v622, %v635
  %638 = vrot.lane.b32.xlu0 %v634, 64
  %v639 = vpop.permute.xlu0 %638
  %641 = vst.msk [vmem:[#allocation5] sm:$0xff] %vm112, %v639
  %643 = vrot.lane.b32.xlu0 %v636, 64
  %v644 = vpop.permute.xlu0 %643
  %646 = vst.msk [vmem:[#allocation4] sm:$0xff] %vm112, %v644
  %647 = vst.msk [vmem:[#allocation3 + $0x8] sm:$0xff] %vm112, %v644
  %v648 = vld [vmem:[#allocation4] sm:$0xff]
  %v649 = vld [vmem:[#allocation2 + $0x20] sm:$0xff]
  %v650 = vld [vmem:[#allocation2 + $0x28] sm:$0xff]
  %v652 = vsel %vm112, %v648, 0
  %654 = vmatpush.msra.mxu0 0.0
  %655 = vmatpush.msra.mxu0 0.0
  %656 = vmatpush.msra.mxu0 0.0
  %657 = vmatpush.msra.mxu0 0.0
  %658 = vmatpush.msra.mxu0 0.0
  %659 = vmatpush.msra.mxu0 0.0
  %660 = vmatpush.msra.mxu0 0.0
  %661 = vmatpush.msra.mxu0 0.0
  %662 = vmatpush.msra.mxu0 %v422
  %663 = vmatpush.msra.mxu0 %v420
  %664 = vmatpush.msra.mxu0 %v418
  %665 = vmatpush.msra.mxu0 %v416
  %666 = vmatpush.msra.mxu0 %v414
  %667 = vmatpush.msra.mxu0 %v412
  %668 = vmatpush.msra.mxu0 %v410
  %669 = vmatpush.msra.mxu0 %v408
  %670 = vmatmul.f32.gmra.mxu0 %v652
  %v671 = vpop.f32.mrf.mxu0
  %v672 = vadd.f32 0.0, %v671
  %673 = vdwg.mxu0
  %674 = vmatpush.msra.mxu0 0.0
  %675 = vmatpush.msra.mxu0 0.0
  %676 = vmatpush.msra.mxu0 0.0
  %677 = vmatpush.msra.mxu0 0.0
  %678 = vmatpush.msra.mxu0 0.0
  %679 = vmatpush.msra.mxu0 0.0
  %680 = vmatpush.msra.mxu0 0.0
  %681 = vmatpush.msra.mxu0 0.0
  %682 = vmatpush.msra.mxu0 %v423
  %683 = vmatpush.msra.mxu0 %v421
  %684 = vmatpush.msra.mxu0 %v419
  %685 = vmatpush.msra.mxu0 %v417
  %686 = vmatpush.msra.mxu0 %v415
  %687 = vmatpush.msra.mxu0 %v413
  %688 = vmatpush.msra.mxu0 %v411
  %689 = vmatpush.msra.mxu0 %v409
  %690 = vmatmul.f32.gmra.mxu0 %v652
  %v691 = vpop.f32.mrf.mxu0
  %v692 = vadd.f32 0.0, %v691
  %693 = vdwg.mxu0
  %v694 = vadd.f32 %v649, %v672
  %v695 = vadd.f32 %v650, %v692
  %v696 = vxor.u32 %v694, 2147483648
  %v697 = vmul.f32 %v696, 1.442695
  %v698 = vpow.pop %v697
  %v699 = vadd.f32 %v698, 1.0
  %v700 = vrcp.pop %v699
  %v701 = vmul.f32 %v699, %v700
  %v702 = vsub.f32 1.0, %v701
  %v703 = vmul.f32 %v700, %v702
  %v704 = vadd.f32 %v700, %v703
  %vm705 = vweird.f32 %v699
  %vm706 = vweird.f32 %v700
  %vm707 = vmor %vm705, %vm706
  %v708 = vsel %vm707, %v700, %v704
  %v709 = vand.u32 2147483647, %v699
  %vm710 = vcmp.eq.f32.partialorder %v709, 8.507059e+37
  %v711 = vand.u32 %v699, 2147483648
  %v712 = vor.u32 1.1754944e-38, %v711
  %v713 = vsel %vm710, %v712, %v708
  %v714 = vmul.f32 1.0, %v713
  %v715 = vtanh.pop %v695
  %v716 = vxor.u32 %v695, 2147483648
  %v717 = vmul.f32 %v716, 1.442695
  %v718 = vpow.pop %v717
  %v719 = vadd.f32 %v718, 1.0
  %v720 = vrcp.pop %v719
  %v721 = vmul.f32 %v719, %v720
  %v722 = vsub.f32 1.0, %v721
  %v723 = vmul.f32 %v720, %v722
  %v724 = vadd.f32 %v720, %v723
  %vm725 = vweird.f32 %v719
  %vm726 = vweird.f32 %v720
  %vm727 = vmor %vm725, %vm726
  %v728 = vsel %vm727, %v720, %v724
  %v729 = vand.u32 2147483647, %v719
  %vm730 = vcmp.eq.f32.partialorder %v729, 8.507059e+37
  %v731 = vand.u32 %v719, 2147483648
  %v732 = vor.u32 1.1754944e-38, %v731
  %v733 = vsel %vm730, %v732, %v728
  %v734 = vmul.f32 1.0, %v733
  %v735 = vld [vmem:[#allocation5] sm:$0xff]
  %737 = vrot.lane.b32.xlu0 %v735, 64
  %v738 = vpop.permute.xlu0 %737
  %v740 = vmul.f32 %v714, %v738
  %v741 = vmul.f32 %v714, %v715
  %743 = vrot.lane.b32.xlu0 %v741, 64
  %v744 = vpop.permute.xlu0 %743
  %v746 = vadd.f32 %v740, %v744
  %v747 = vtanh.pop %v746
  %v748 = vmul.f32 %v734, %v747
  %750 = vrot.lane.b32.xlu0 %v746, 64
  %v751 = vpop.permute.xlu0 %750
  %753 = vst.msk [vmem:[#allocation5] sm:$0xff] %vm112, %v751
  %755 = vrot.lane.b32.xlu0 %v748, 64
  %v756 = vpop.permute.xlu0 %755
  %758 = vst.msk [vmem:[#allocation4] sm:$0xff] %vm112, %v756
  %759 = vst.msk [vmem:[#allocation3 + $0x10] sm:$0xff] %vm112, %v756
  %v760 = vld [vmem:[#allocation4] sm:$0xff]
  %v761 = vld [vmem:[#allocation2 + $0x30] sm:$0xff]
  %v762 = vld [vmem:[#allocation2 + $0x38] sm:$0xff]
  %v764 = vsel %vm112, %v760, 0
  %766 = vmatpush.msra.mxu0 0.0
  %767 = vmatpush.msra.mxu0 0.0
  %768 = vmatpush.msra.mxu0 0.0
  %769 = vmatpush.msra.mxu0 0.0
  %770 = vmatpush.msra.mxu0 0.0
  %771 = vmatpush.msra.mxu0 0.0
  %772 = vmatpush.msra.mxu0 0.0
  %773 = vmatpush.msra.mxu0 0.0
  %774 = vmatpush.msra.mxu0 %v422
  %775 = vmatpush.msra.mxu0 %v420
  %776 = vmatpush.msra.mxu0 %v418
  %777 = vmatpush.msra.mxu0 %v416
  %778 = vmatpush.msra.mxu0 %v414
  %779 = vmatpush.msra.mxu0 %v412
  %780 = vmatpush.msra.mxu0 %v410
  %781 = vmatpush.msra.mxu0 %v408
  %782 = vmatmul.f32.gmra.mxu0 %v764
  %v783 = vpop.f32.mrf.mxu0
  %v784 = vadd.f32 0.0, %v783
  %785 = vdwg.mxu0
  %786 = vmatpush.msra.mxu0 0.0
  %787 = vmatpush.msra.mxu0 0.0
  %788 = vmatpush.msra.mxu0 0.0
  %789 = vmatpush.msra.mxu0 0.0
  %790 = vmatpush.msra.mxu0 0.0
  %791 = vmatpush.msra.mxu0 0.0
  %792 = vmatpush.msra.mxu0 0.0
  %793 = vmatpush.msra.mxu0 0.0
  %794 = vmatpush.msra.mxu0 %v423
  %795 = vmatpush.msra.mxu0 %v421
  %796 = vmatpush.msra.mxu0 %v419
  %797 = vmatpush.msra.mxu0 %v417
  %798 = vmatpush.msra.mxu0 %v415
  %799 = vmatpush.msra.mxu0 %v413
  %800 = vmatpush.msra.mxu0 %v411
  %801 = vmatpush.msra.mxu0 %v409
  %802 = vmatmul.f32.gmra.mxu0 %v764
  %v803 = vpop.f32.mrf.mxu0
  %v804 = vadd.f32 0.0, %v803
  %805 = vdwg.mxu0
  %v806 = vadd.f32 %v761, %v784
  %v807 = vadd.f32 %v762, %v804
  %v808 = vxor.u32 %v806, 2147483648
  %v809 = vmul.f32 %v808, 1.442695
  %v810 = vpow.pop %v809
  %v811 = vadd.f32 %v810, 1.0
  %v812 = vrcp.pop %v811
  %v813 = vmul.f32 %v811, %v812
  %v814 = vsub.f32 1.0, %v813
  %v815 = vmul.f32 %v812, %v814
  %v816 = vadd.f32 %v812, %v815
  %vm817 = vweird.f32 %v811
  %vm818 = vweird.f32 %v812
  %vm819 = vmor %vm817, %vm818
  %v820 = vsel %vm819, %v812, %v816
  %v821 = vand.u32 2147483647, %v811
  %vm822 = vcmp.eq.f32.partialorder %v821, 8.507059e+37
  %v823 = vand.u32 %v811, 2147483648
  %v824 = vor.u32 1.1754944e-38, %v823
  %v825 = vsel %vm822, %v824, %v820
  %v826 = vmul.f32 1.0, %v825
  %v827 = vtanh.pop %v807
  %v828 = vxor.u32 %v807, 2147483648
  %v829 = vmul.f32 %v828, 1.442695
  %v830 = vpow.pop %v829
  %v831 = vadd.f32 %v830, 1.0
  %v832 = vrcp.pop %v831
  %v833 = vmul.f32 %v831, %v832
  %v834 = vsub.f32 1.0, %v833
  %v835 = vmul.f32 %v832, %v834
  %v836 = vadd.f32 %v832, %v835
  %vm837 = vweird.f32 %v831
  %vm838 = vweird.f32 %v832
  %vm839 = vmor %vm837, %vm838
  %v840 = vsel %vm839, %v832, %v836
  %v841 = vand.u32 2147483647, %v831
  %vm842 = vcmp.eq.f32.partialorder %v841, 8.507059e+37
  %v843 = vand.u32 %v831, 2147483648
  %v844 = vor.u32 1.1754944e-38, %v843
  %v845 = vsel %vm842, %v844, %v840
  %v846 = vmul.f32 1.0, %v845
  %v847 = vld [vmem:[#allocation5] sm:$0xff]
  %849 = vrot.lane.b32.xlu0 %v847, 64
  %v850 = vpop.permute.xlu0 %849
  %v852 = vmul.f32 %v826, %v850
  %v853 = vmul.f32 %v826, %v827
  %855 = vrot.lane.b32.xlu0 %v853, 64
  %v856 = vpop.permute.xlu0 %855
  %v858 = vadd.f32 %v852, %v856
  %v859 = vtanh.pop %v858
  %v860 = vmul.f32 %v846, %v859
  %862 = vrot.lane.b32.xlu0 %v858, 64
  %v863 = vpop.permute.xlu0 %862
  %865 = vst.msk [vmem:[#allocation5] sm:$0xff] %vm112, %v863
  %867 = vrot.lane.b32.xlu0 %v860, 64
  %v868 = vpop.permute.xlu0 %867
  %870 = vst.msk [vmem:[#allocation4] sm:$0xff] %vm112, %v868
  %871 = vst.msk [vmem:[#allocation3 + $0x18] sm:$0xff] %vm112, %v868
  %v872 = vld [vmem:[#allocation4] sm:$0xff]
  %v873 = vld [vmem:[#allocation2 + $0x40] sm:$0xff]
  %v874 = vld [vmem:[#allocation2 + $0x48] sm:$0xff]
  %v876 = vsel %vm112, %v872, 0
  %878 = vmatpush.msra.mxu0 0.0
  %879 = vmatpush.msra.mxu0 0.0
  %880 = vmatpush.msra.mxu0 0.0
  %881 = vmatpush.msra.mxu0 0.0
  %882 = vmatpush.msra.mxu0 0.0
  %883 = vmatpush.msra.mxu0 0.0
  %884 = vmatpush.msra.mxu0 0.0
  %885 = vmatpush.msra.mxu0 0.0
  %886 = vmatpush.msra.mxu0 %v422
  %887 = vmatpush.msra.mxu0 %v420
  %888 = vmatpush.msra.mxu0 %v418
  %889 = vmatpush.msra.mxu0 %v416
  %890 = vmatpush.msra.mxu0 %v414
  %891 = vmatpush.msra.mxu0 %v412
  %892 = vmatpush.msra.mxu0 %v410
  %893 = vmatpush.msra.mxu0 %v408
  %894 = vmatmul.f32.gmra.mxu0 %v876
  %v895 = vpop.f32.mrf.mxu0
  %v896 = vadd.f32 0.0, %v895
  %897 = vdwg.mxu0
  %898 = vmatpush.msra.mxu0 0.0
  %899 = vmatpush.msra.mxu0 0.0
  %900 = vmatpush.msra.mxu0 0.0
  %901 = vmatpush.msra.mxu0 0.0
  %902 = vmatpush.msra.mxu0 0.0
  %903 = vmatpush.msra.mxu0 0.0
  %904 = vmatpush.msra.mxu0 0.0
  %905 = vmatpush.msra.mxu0 0.0
  %906 = vmatpush.msra.mxu0 %v423
  %907 = vmatpush.msra.mxu0 %v421
  %908 = vmatpush.msra.mxu0 %v419
  %909 = vmatpush.msra.mxu0 %v417
  %910 = vmatpush.msra.mxu0 %v415
  %911 = vmatpush.msra.mxu0 %v413
  %912 = vmatpush.msra.mxu0 %v411
  %913 = vmatpush.msra.mxu0 %v409
  %914 = vmatmul.f32.gmra.mxu0 %v876
  %v915 = vpop.f32.mrf.mxu0
  %v916 = vadd.f32 0.0, %v915
  %917 = vdwg.mxu0
  %v918 = vadd.f32 %v873, %v896
  %v919 = vadd.f32 %v874, %v916
  %v920 = vxor.u32 %v918, 2147483648
  %v921 = vmul.f32 %v920, 1.442695
  %v922 = vpow.pop %v921
  %v923 = vadd.f32 %v922, 1.0
  %v924 = vrcp.pop %v923
  %v925 = vmul.f32 %v923, %v924
  %v926 = vsub.f32 1.0, %v925
  %v927 = vmul.f32 %v924, %v926
  %v928 = vadd.f32 %v924, %v927
  %vm929 = vweird.f32 %v923
  %vm930 = vweird.f32 %v924
  %vm931 = vmor %vm929, %vm930
  %v932 = vsel %vm931, %v924, %v928
  %v933 = vand.u32 2147483647, %v923
  %vm934 = vcmp.eq.f32.partialorder %v933, 8.507059e+37
  %v935 = vand.u32 %v923, 2147483648
  %v936 = vor.u32 1.1754944e-38, %v935
  %v937 = vsel %vm934, %v936, %v932
  %v938 = vmul.f32 1.0, %v937
  %v939 = vtanh.pop %v919
  %v940 = vxor.u32 %v919, 2147483648
  %v941 = vmul.f32 %v940, 1.442695
  %v942 = vpow.pop %v941
  %v943 = vadd.f32 %v942, 1.0
  %v944 = vrcp.pop %v943
  %v945 = vmul.f32 %v943, %v944
  %v946 = vsub.f32 1.0, %v945
  %v947 = vmul.f32 %v944, %v946
  %v948 = vadd.f32 %v944, %v947
  %vm949 = vweird.f32 %v943
  %vm950 = vweird.f32 %v944
  %vm951 = vmor %vm949, %vm950
  %v952 = vsel %vm951, %v944, %v948
  %v953 = vand.u32 2147483647, %v943
  %vm954 = vcmp.eq.f32.partialorder %v953, 8.507059e+37
  %v955 = vand.u32 %v943, 2147483648
  %v956 = vor.u32 1.1754944e-38, %v955
  %v957 = vsel %vm954, %v956, %v952
  %v958 = vmul.f32 1.0, %v957
  %v959 = vld [vmem:[#allocation5] sm:$0xff]
  %961 = vrot.lane.b32.xlu0 %v959, 64
  %v962 = vpop.permute.xlu0 %961
  %v964 = vmul.f32 %v938, %v962
  %v965 = vmul.f32 %v938, %v939
  %967 = vrot.lane.b32.xlu0 %v965, 64
  %v968 = vpop.permute.xlu0 %967
  %v970 = vadd.f32 %v964, %v968
  %v971 = vtanh.pop %v970
  %v972 = vmul.f32 %v958, %v971
  %974 = vrot.lane.b32.xlu0 %v970, 64
  %v975 = vpop.permute.xlu0 %974
  %977 = vst.msk [vmem:[#allocation5] sm:$0xff] %vm112, %v975
  %979 = vrot.lane.b32.xlu0 %v972, 64
  %v980 = vpop.permute.xlu0 %979
  %982 = vst.msk [vmem:[#allocation4] sm:$0xff] %vm112, %v980
  %983 = vst.msk [vmem:[#allocation3 + $0x20] sm:$0xff] %vm112, %v980
  %v984 = vld [vmem:[#allocation4] sm:$0xff]
  %v985 = vld [vmem:[#allocation2 + $0x50] sm:$0xff]
  %v986 = vld [vmem:[#allocation2 + $0x58] sm:$0xff]
  %v988 = vsel %vm112, %v984, 0
  %990 = vmatpush.msra.mxu0 0.0
  %991 = vmatpush.msra.mxu0 0.0
  %992 = vmatpush.msra.mxu0 0.0
  %993 = vmatpush.msra.mxu0 0.0
  %994 = vmatpush.msra.mxu0 0.0
  %995 = vmatpush.msra.mxu0 0.0
  %996 = vmatpush.msra.mxu0 0.0
  %997 = vmatpush.msra.mxu0 0.0
  %998 = vmatpush.msra.mxu0 %v422
  %999 = vmatpush.msra.mxu0 %v420
  %1000 = vmatpush.msra.mxu0 %v418
  %1001 = vmatpush.msra.mxu0 %v416
  %1002 = vmatpush.msra.mxu0 %v414
  %1003 = vmatpush.msra.mxu0 %v412
  %1004 = vmatpush.msra.mxu0 %v410
  %1005 = vmatpush.msra.mxu0 %v408
  %1006 = vmatmul.f32.gmra.mxu0 %v988
  %v1007 = vpop.f32.mrf.mxu0
  %v1008 = vadd.f32 0.0, %v1007
  %1009 = vdwg.mxu0
  %1010 = vmatpush.msra.mxu0 0.0
  %1011 = vmatpush.msra.mxu0 0.0
  %1012 = vmatpush.msra.mxu0 0.0
  %1013 = vmatpush.msra.mxu0 0.0
  %1014 = vmatpush.msra.mxu0 0.0
  %1015 = vmatpush.msra.mxu0 0.0
  %1016 = vmatpush.msra.mxu0 0.0
  %1017 = vmatpush.msra.mxu0 0.0
  %1018 = vmatpush.msra.mxu0 %v423
  %1019 = vmatpush.msra.mxu0 %v421
  %1020 = vmatpush.msra.mxu0 %v419
  %1021 = vmatpush.msra.mxu0 %v417
  %1022 = vmatpush.msra.mxu0 %v415
  %1023 = vmatpush.msra.mxu0 %v413
  %1024 = vmatpush.msra.mxu0 %v411
  %1025 = vmatpush.msra.mxu0 %v409
  %1026 = vmatmul.f32.gmra.mxu0 %v988
  %v1027 = vpop.f32.mrf.mxu0
  %v1028 = vadd.f32 0.0, %v1027
  %1029 = vdwg.mxu0
  %v1030 = vadd.f32 %v985, %v1008
  %v1031 = vadd.f32 %v986, %v1028
  %v1032 = vxor.u32 %v1030, 2147483648
  %v1033 = vmul.f32 %v1032, 1.442695
  %v1034 = vpow.pop %v1033
  %v1035 = vadd.f32 %v1034, 1.0
  %v1036 = vrcp.pop %v1035
  %v1037 = vmul.f32 %v1035, %v1036
  %v1038 = vsub.f32 1.0, %v1037
  %v1039 = vmul.f32 %v1036, %v1038
  %v1040 = vadd.f32 %v1036, %v1039
  %vm1041 = vweird.f32 %v1035
  %vm1042 = vweird.f32 %v1036
  %vm1043 = vmor %vm1041, %vm1042
  %v1044 = vsel %vm1043, %v1036, %v1040
  %v1045 = vand.u32 2147483647, %v1035
  %vm1046 = vcmp.eq.f32.partialorder %v1045, 8.507059e+37
  %v1047 = vand.u32 %v1035, 2147483648
  %v1048 = vor.u32 1.1754944e-38, %v1047
  %v1049 = vsel %vm1046, %v1048, %v1044
  %v1050 = vmul.f32 1.0, %v1049
  %v1051 = vtanh.pop %v1031
  %v1052 = vxor.u32 %v1031, 2147483648
  %v1053 = vmul.f32 %v1052, 1.442695
  %v1054 = vpow.pop %v1053
  %v1055 = vadd.f32 %v1054, 1.0
  %v1056 = vrcp.pop %v1055
  %v1057 = vmul.f32 %v1055, %v1056
  %v1058 = vsub.f32 1.0, %v1057
  %v1059 = vmul.f32 %v1056, %v1058
  %v1060 = vadd.f32 %v1056, %v1059
  %vm1061 = vweird.f32 %v1055
  %vm1062 = vweird.f32 %v1056
  %vm1063 = vmor %vm1061, %vm1062
  %v1064 = vsel %vm1063, %v1056, %v1060
  %v1065 = vand.u32 2147483647, %v1055
  %vm1066 = vcmp.eq.f32.partialorder %v1065, 8.507059e+37
  %v1067 = vand.u32 %v1055, 2147483648
  %v1068 = vor.u32 1.1754944e-38, %v1067
  %v1069 = vsel %vm1066, %v1068, %v1064
  %v1070 = vmul.f32 1.0, %v1069
  %v1071 = vld [vmem:[#allocation5] sm:$0xff]
  %1073 = vrot.lane.b32.xlu0 %v1071, 64
  %v1074 = vpop.permute.xlu0 %1073
  %v1076 = vmul.f32 %v1050, %v1074
  %v1077 = vmul.f32 %v1050, %v1051
  %1079 = vrot.lane.b32.xlu0 %v1077, 64
  %v1080 = vpop.permute.xlu0 %1079
  %v1082 = vadd.f32 %v1076, %v1080
  %v1083 = vtanh.pop %v1082
  %v1084 = vmul.f32 %v1070, %v1083
  %1086 = vrot.lane.b32.xlu0 %v1082, 64
  %v1087 = vpop.permute.xlu0 %1086
  %1089 = vst.msk [vmem:[#allocation5] sm:$0xff] %vm112, %v1087
  %1091 = vrot.lane.b32.xlu0 %v1084, 64
  %v1092 = vpop.permute.xlu0 %1091
  %1094 = vst.msk [vmem:[#allocation4] sm:$0xff] %vm112, %v1092
  %1095 = vst.msk [vmem:[#allocation3 + $0x28] sm:$0xff] %vm112, %v1092
  %v1096 = vld [vmem:[#allocation4] sm:$0xff]
  %v1097 = vld [vmem:[#allocation2 + $0x60] sm:$0xff]
  %v1098 = vld [vmem:[#allocation2 + $0x68] sm:$0xff]
  %v1100 = vsel %vm112, %v1096, 0
  %1102 = vmatpush.msra.mxu0 0.0
  %1103 = vmatpush.msra.mxu0 0.0
  %1104 = vmatpush.msra.mxu0 0.0
  %1105 = vmatpush.msra.mxu0 0.0
  %1106 = vmatpush.msra.mxu0 0.0
  %1107 = vmatpush.msra.mxu0 0.0
  %1108 = vmatpush.msra.mxu0 0.0
  %1109 = vmatpush.msra.mxu0 0.0
  %1110 = vmatpush.msra.mxu0 %v422
  %1111 = vmatpush.msra.mxu0 %v420
  %1112 = vmatpush.msra.mxu0 %v418
  %1113 = vmatpush.msra.mxu0 %v416
  %1114 = vmatpush.msra.mxu0 %v414
  %1115 = vmatpush.msra.mxu0 %v412
  %1116 = vmatpush.msra.mxu0 %v410
  %1117 = vmatpush.msra.mxu0 %v408
  %1118 = vmatmul.f32.gmra.mxu0 %v1100
  %v1119 = vpop.f32.mrf.mxu0
  %v1120 = vadd.f32 0.0, %v1119
  %1121 = vdwg.mxu0
  %1122 = vmatpush.msra.mxu0 0.0
  %1123 = vmatpush.msra.mxu0 0.0
  %1124 = vmatpush.msra.mxu0 0.0
  %1125 = vmatpush.msra.mxu0 0.0
  %1126 = vmatpush.msra.mxu0 0.0
  %1127 = vmatpush.msra.mxu0 0.0
  %1128 = vmatpush.msra.mxu0 0.0
  %1129 = vmatpush.msra.mxu0 0.0
  %1130 = vmatpush.msra.mxu0 %v423
  %1131 = vmatpush.msra.mxu0 %v421
  %1132 = vmatpush.msra.mxu0 %v419
  %1133 = vmatpush.msra.mxu0 %v417
  %1134 = vmatpush.msra.mxu0 %v415
  %1135 = vmatpush.msra.mxu0 %v413
  %1136 = vmatpush.msra.mxu0 %v411
  %1137 = vmatpush.msra.mxu0 %v409
  %1138 = vmatmul.f32.gmra.mxu0 %v1100
  %v1139 = vpop.f32.mrf.mxu0
  %v1140 = vadd.f32 0.0, %v1139
  %1141 = vdwg.mxu0
  %v1142 = vadd.f32 %v1097, %v1120
  %v1143 = vadd.f32 %v1098, %v1140
  %v1144 = vxor.u32 %v1142, 2147483648
  %v1145 = vmul.f32 %v1144, 1.442695
  %v1146 = vpow.pop %v1145
  %v1147 = vadd.f32 %v1146, 1.0
  %v1148 = vrcp.pop %v1147
  %v1149 = vmul.f32 %v1147, %v1148
  %v1150 = vsub.f32 1.0, %v1149
  %v1151 = vmul.f32 %v1148, %v1150
  %v1152 = vadd.f32 %v1148, %v1151
  %vm1153 = vweird.f32 %v1147
  %vm1154 = vweird.f32 %v1148
  %vm1155 = vmor %vm1153, %vm1154
  %v1156 = vsel %vm1155, %v1148, %v1152
  %v1157 = vand.u32 2147483647, %v1147
  %vm1158 = vcmp.eq.f32.partialorder %v1157, 8.507059e+37
  %v1159 = vand.u32 %v1147, 2147483648
  %v1160 = vor.u32 1.1754944e-38, %v1159
  %v1161 = vsel %vm1158, %v1160, %v1156
  %v1162 = vmul.f32 1.0, %v1161
  %v1163 = vtanh.pop %v1143
  %v1164 = vxor.u32 %v1143, 2147483648
  %v1165 = vmul.f32 %v1164, 1.442695
  %v1166 = vpow.pop %v1165
  %v1167 = vadd.f32 %v1166, 1.0
  %v1168 = vrcp.pop %v1167
  %v1169 = vmul.f32 %v1167, %v1168
  %v1170 = vsub.f32 1.0, %v1169
  %v1171 = vmul.f32 %v1168, %v1170
  %v1172 = vadd.f32 %v1168, %v1171
  %vm1173 = vweird.f32 %v1167
  %vm1174 = vweird.f32 %v1168
  %vm1175 = vmor %vm1173, %vm1174
  %v1176 = vsel %vm1175, %v1168, %v1172
  %v1177 = vand.u32 2147483647, %v1167
  %vm1178 = vcmp.eq.f32.partialorder %v1177, 8.507059e+37
  %v1179 = vand.u32 %v1167, 2147483648
  %v1180 = vor.u32 1.1754944e-38, %v1179
  %v1181 = vsel %vm1178, %v1180, %v1176
  %v1182 = vmul.f32 1.0, %v1181
  %v1183 = vld [vmem:[#allocation5] sm:$0xff]
  %1185 = vrot.lane.b32.xlu0 %v1183, 64
  %v1186 = vpop.permute.xlu0 %1185
  %v1188 = vmul.f32 %v1162, %v1186
  %v1189 = vmul.f32 %v1162, %v1163
  %1191 = vrot.lane.b32.xlu0 %v1189, 64
  %v1192 = vpop.permute.xlu0 %1191
  %v1194 = vadd.f32 %v1188, %v1192
  %v1195 = vtanh.pop %v1194
  %v1196 = vmul.f32 %v1182, %v1195
  %1198 = vrot.lane.b32.xlu0 %v1194, 64
  %v1199 = vpop.permute.xlu0 %1198
  %1201 = vst.msk [vmem:[#allocation5] sm:$0xff] %vm112, %v1199
  %1203 = vrot.lane.b32.xlu0 %v1196, 64
  %v1204 = vpop.permute.xlu0 %1203
  %1206 = vst.msk [vmem:[#allocation4] sm:$0xff] %vm112, %v1204
  %1207 = vst.msk [vmem:[#allocation3 + $0x30] sm:$0xff] %vm112, %v1204
  %v1208 = vld [vmem:[#allocation4] sm:$0xff]
  %v1209 = vld [vmem:[#allocation2 + $0x70] sm:$0xff]
  %v1210 = vld [vmem:[#allocation2 + $0x78] sm:$0xff]
  %v1212 = vsel %vm112, %v1208, 0
  %1214 = vmatpush.msra.mxu0 0.0
  %1215 = vmatpush.msra.mxu0 0.0
  %1216 = vmatpush.msra.mxu0 0.0
  %1217 = vmatpush.msra.mxu0 0.0
  %1218 = vmatpush.msra.mxu0 0.0
  %1219 = vmatpush.msra.mxu0 0.0
  %1220 = vmatpush.msra.mxu0 0.0
  %1221 = vmatpush.msra.mxu0 0.0
  %1222 = vmatpush.msra.mxu0 %v422
  %1223 = vmatpush.msra.mxu0 %v420
  %1224 = vmatpush.msra.mxu0 %v418
  %1225 = vmatpush.msra.mxu0 %v416
  %1226 = vmatpush.msra.mxu0 %v414
  %1227 = vmatpush.msra.mxu0 %v412
  %1228 = vmatpush.msra.mxu0 %v410
  %1229 = vmatpush.msra.mxu0 %v408
  %1230 = vmatmul.f32.gmra.mxu0 %v1212
  %v1231 = vpop.f32.mrf.mxu0
  %v1232 = vadd.f32 0.0, %v1231
  %1233 = vdwg.mxu0
  %1234 = vmatpush.msra.mxu0 0.0
  %1235 = vmatpush.msra.mxu0 0.0
  %1236 = vmatpush.msra.mxu0 0.0
  %1237 = vmatpush.msra.mxu0 0.0
  %1238 = vmatpush.msra.mxu0 0.0
  %1239 = vmatpush.msra.mxu0 0.0
  %1240 = vmatpush.msra.mxu0 0.0
  %1241 = vmatpush.msra.mxu0 0.0
  %1242 = vmatpush.msra.mxu0 %v423
  %1243 = vmatpush.msra.mxu0 %v421
  %1244 = vmatpush.msra.mxu0 %v419
  %1245 = vmatpush.msra.mxu0 %v417
  %1246 = vmatpush.msra.mxu0 %v415
  %1247 = vmatpush.msra.mxu0 %v413
  %1248 = vmatpush.msra.mxu0 %v411
  %1249 = vmatpush.msra.mxu0 %v409
  %1250 = vmatmul.f32.gmra.mxu0 %v1212
  %v1251 = vpop.f32.mrf.mxu0
  %v1252 = vadd.f32 0.0, %v1251
  %1253 = vdwg.mxu0
  %v1254 = vadd.f32 %v1209, %v1232
  %v1255 = vadd.f32 %v1210, %v1252
  %v1256 = vxor.u32 %v1254, 2147483648
  %v1257 = vmul.f32 %v1256, 1.442695
  %v1258 = vpow.pop %v1257
  %v1259 = vadd.f32 %v1258, 1.0
  %v1260 = vrcp.pop %v1259
  %v1261 = vmul.f32 %v1259, %v1260
  %v1262 = vsub.f32 1.0, %v1261
  %v1263 = vmul.f32 %v1260, %v1262
  %v1264 = vadd.f32 %v1260, %v1263
  %vm1265 = vweird.f32 %v1259
  %vm1266 = vweird.f32 %v1260
  %vm1267 = vmor %vm1265, %vm1266
  %v1268 = vsel %vm1267, %v1260, %v1264
  %v1269 = vand.u32 2147483647, %v1259
  %vm1270 = vcmp.eq.f32.partialorder %v1269, 8.507059e+37
  %v1271 = vand.u32 %v1259, 2147483648
  %v1272 = vor.u32 1.1754944e-38, %v1271
  %v1273 = vsel %vm1270, %v1272, %v1268
  %v1274 = vmul.f32 1.0, %v1273
  %v1275 = vtanh.pop %v1255
  %v1276 = vxor.u32 %v1255, 2147483648
  %v1277 = vmul.f32 %v1276, 1.442695
  %v1278 = vpow.pop %v1277
  %v1279 = vadd.f32 %v1278, 1.0
  %v1280 = vrcp.pop %v1279
  %v1281 = vmul.f32 %v1279, %v1280
  %v1282 = vsub.f32 1.0, %v1281
  %v1283 = vmul.f32 %v1280, %v1282
  %v1284 = vadd.f32 %v1280, %v1283
  %vm1285 = vweird.f32 %v1279
  %vm1286 = vweird.f32 %v1280
  %vm1287 = vmor %vm1285, %vm1286
  %v1288 = vsel %vm1287, %v1280, %v1284
  %v1289 = vand.u32 2147483647, %v1279
  %vm1290 = vcmp.eq.f32.partialorder %v1289, 8.507059e+37
  %v1291 = vand.u32 %v1279, 2147483648
  %v1292 = vor.u32 1.1754944e-38, %v1291
  %v1293 = vsel %vm1290, %v1292, %v1288
  %v1294 = vmul.f32 1.0, %v1293
  %v1295 = vld [vmem:[#allocation5] sm:$0xff]
  %1297 = vrot.lane.b32.xlu0 %v1295, 64
  %v1298 = vpop.permute.xlu0 %1297
  %v1300 = vmul.f32 %v1274, %v1298
  %v1301 = vmul.f32 %v1274, %v1275
  %1303 = vrot.lane.b32.xlu0 %v1301, 64
  %v1304 = vpop.permute.xlu0 %1303
  %v1306 = vadd.f32 %v1300, %v1304
  %v1307 = vtanh.pop %v1306
  %v1308 = vmul.f32 %v1294, %v1307
  %1310 = vrot.lane.b32.xlu0 %v1306, 64
  %v1311 = vpop.permute.xlu0 %1310
  %1313 = vst.msk [vmem:[#allocation5] sm:$0xff] %vm112, %v1311
  %1315 = vrot.lane.b32.xlu0 %v1308, 64
  %v1316 = vpop.permute.xlu0 %1315
  %1318 = vst.msk [vmem:[#allocation4] sm:$0xff] %vm112, %v1316
  %1319 = vst.msk [vmem:[#allocation3 + $0x38] sm:$0xff] %vm112, %v1316
  %v1320 = vld [vmem:[#allocation3] sm:$0xff]
  %v1321 = vld [vmem:[#allocation3 + $0x8] sm:$0xff]
  %v1322 = vld [vmem:[#allocation3 + $0x10] sm:$0xff]
  %v1323 = vld [vmem:[#allocation3 + $0x18] sm:$0xff]
  %v1324 = vld [vmem:[#allocation3 + $0x20] sm:$0xff]
  %v1325 = vld [vmem:[#allocation3 + $0x28] sm:$0xff]
  %v1326 = vld [vmem:[#allocation3 + $0x30] sm:$0xff]
  %v1327 = vld [vmem:[#allocation3 + $0x38] sm:$0xff]
  %v1328 = vld [vmem:[%s2 + $0x110] sm:$0xff]
  %v1329 = vld [vmem:[%s2 + $0x118] sm:$0xff]
  %v1330 = vld [vmem:[%s2 + $0x120] sm:$0xff]
  %v1331 = vld [vmem:[%s2 + $0x128] sm:$0xff]
  %v1332 = vld [vmem:[%s2 + $0x130] sm:$0xff]
  %v1333 = vld [vmem:[%s2 + $0x138] sm:$0xff]
  %v1334 = vld [vmem:[%s2 + $0x140] sm:$0xff]
  %v1335 = vld [vmem:[%s2 + $0x148] sm:$0xff]
  %v1336 = vld [vmem:[%s2 + $0x150] sm:$0xff]
  %v1337 = vld [vmem:[%s2 + $0x158] sm:$0xff]
  %v1338 = vld [vmem:[%s2 + $0x160] sm:$0xff]
  %v1339 = vld [vmem:[%s2 + $0x168] sm:$0xff]
  %v1340 = vld [vmem:[%s2 + $0x170] sm:$0xff]
  %v1341 = vld [vmem:[%s2 + $0x178] sm:$0xff]
  %v1342 = vld [vmem:[%s2 + $0x180] sm:$0xff]
  %v1343 = vld [vmem:[%s2 + $0x188] sm:$0xff]
  %s1344 = scalar_lea.vmem %s2, 400
  %v1345 = vld [vmem:[%s1344] ss:$8 sm:$0x3]
  %v1347 = vperm.slane %v1345, 0
  %v1348 = vperm.slane %v1345, 1
  %v1352 = vsel %vm112, %v1320, 0
  %v1355 = vsel %vm112, %v1321, 0
  %v1358 = vsel %vm112, %v1322, 0
  %v1361 = vsel %vm112, %v1323, 0
  %v1364 = vsel %vm112, %v1324, 0
  %v1367 = vsel %vm112, %v1325, 0
  %v1370 = vsel %vm112, %v1326, 0
  %v1373 = vsel %vm112, %v1327, 0
  %1375 = vmatpush.msra.mxu0 0.0
  %1376 = vmatpush.msra.mxu0 0.0
  %1377 = vmatpush.msra.mxu0 0.0
  %1378 = vmatpush.msra.mxu0 0.0
  %1379 = vmatpush.msra.mxu0 0.0
  %1380 = vmatpush.msra.mxu0 0.0
  %1381 = vmatpush.msra.mxu0 0.0
  %1382 = vmatpush.msra.mxu0 0.0
  %1383 = vmatpush.msra.mxu0 %v1342
  %1384 = vmatpush.msra.mxu0 %v1340
  %1385 = vmatpush.msra.mxu0 %v1338
  %1386 = vmatpush.msra.mxu0 %v1336
  %1387 = vmatpush.msra.mxu0 %v1334
  %1388 = vmatpush.msra.mxu0 %v1332
  %1389 = vmatpush.msra.mxu0 %v1330
  %1390 = vmatpush.msra.mxu0 %v1328
  %1391 = vmatmul.f32.gmra.mxu0 %v1352
  %v1392 = vpop.f32.mrf.mxu0
  %v1393 = vadd.f32 %v1347, %v1392
  %1394 = vmatmul.f32.gmra.mxu0 %v1355
  %v1395 = vpop.f32.mrf.mxu0
  %v1396 = vadd.f32 %v1347, %v1395
  %1397 = vmatmul.f32.gmra.mxu0 %v1358
  %v1398 = vpop.f32.mrf.mxu0
  %v1399 = vadd.f32 %v1347, %v1398
  %1400 = vmatmul.f32.gmra.mxu0 %v1361
  %v1401 = vpop.f32.mrf.mxu0
  %v1402 = vadd.f32 %v1347, %v1401
  %1403 = vmatmul.f32.gmra.mxu0 %v1364
  %v1404 = vpop.f32.mrf.mxu0
  %v1405 = vadd.f32 %v1347, %v1404
  %1406 = vmatmul.f32.gmra.mxu0 %v1367
  %v1407 = vpop.f32.mrf.mxu0
  %v1408 = vadd.f32 %v1347, %v1407
  %1409 = vmatmul.f32.gmra.mxu0 %v1370
  %v1410 = vpop.f32.mrf.mxu0
  %v1411 = vadd.f32 %v1347, %v1410
  %1412 = vmatmul.f32.gmra.mxu0 %v1373
  %v1413 = vpop.f32.mrf.mxu0
  %v1414 = vadd.f32 %v1347, %v1413
  %1415 = vdwg.mxu0
  %1416 = vmatpush.msra.mxu0 0.0
  %1417 = vmatpush.msra.mxu0 0.0
  %1418 = vmatpush.msra.mxu0 0.0
  %1419 = vmatpush.msra.mxu0 0.0
  %1420 = vmatpush.msra.mxu0 0.0
  %1421 = vmatpush.msra.mxu0 0.0
  %1422 = vmatpush.msra.mxu0 0.0
  %1423 = vmatpush.msra.mxu0 0.0
  %1424 = vmatpush.msra.mxu0 %v1343
  %1425 = vmatpush.msra.mxu0 %v1341
  %1426 = vmatpush.msra.mxu0 %v1339
  %1427 = vmatpush.msra.mxu0 %v1337
  %1428 = vmatpush.msra.mxu0 %v1335
  %1429 = vmatpush.msra.mxu0 %v1333
  %1430 = vmatpush.msra.mxu0 %v1331
  %1431 = vmatpush.msra.mxu0 %v1329
  %1432 = vmatmul.f32.gmra.mxu0 %v1352
  %v1433 = vpop.f32.mrf.mxu0
  %v1434 = vadd.f32 %v1348, %v1433
  %1435 = vmatmul.f32.gmra.mxu0 %v1355
  %v1436 = vpop.f32.mrf.mxu0
  %v1437 = vadd.f32 %v1348, %v1436
  %1438 = vmatmul.f32.gmra.mxu0 %v1358
  %v1439 = vpop.f32.mrf.mxu0
  %v1440 = vadd.f32 %v1348, %v1439
  %1441 = vmatmul.f32.gmra.mxu0 %v1361
  %v1442 = vpop.f32.mrf.mxu0
  %v1443 = vadd.f32 %v1348, %v1442
  %1444 = vmatmul.f32.gmra.mxu0 %v1364
  %v1445 = vpop.f32.mrf.mxu0
  %v1446 = vadd.f32 %v1348, %v1445
  %1447 = vmatmul.f32.gmra.mxu0 %v1367
  %v1448 = vpop.f32.mrf.mxu0
  %v1449 = vadd.f32 %v1348, %v1448
  %1450 = vmatmul.f32.gmra.mxu0 %v1370
  %v1451 = vpop.f32.mrf.mxu0
  %v1452 = vadd.f32 %v1348, %v1451
  %1453 = vmatmul.f32.gmra.mxu0 %v1373
  %v1454 = vpop.f32.mrf.mxu0
  %v1455 = vadd.f32 %v1348, %v1454
  %1456 = vdwg.mxu0
  %1457 = vst [vmem:[%s3] sm:$0xff] %v1393
  %1458 = vst [vmem:[%s3 + $0x8] sm:$0xff] %v1434
  %1459 = vst [vmem:[%s3 + $0x10] sm:$0xff] %v1396
  %1460 = vst [vmem:[%s3 + $0x18] sm:$0xff] %v1437
  %1461 = vst [vmem:[%s3 + $0x20] sm:$0xff] %v1399
  %1462 = vst [vmem:[%s3 + $0x28] sm:$0xff] %v1440
  %1463 = vst [vmem:[%s3 + $0x30] sm:$0xff] %v1402
  %1464 = vst [vmem:[%s3 + $0x38] sm:$0xff] %v1443
  %1465 = vst [vmem:[%s3 + $0x40] sm:$0xff] %v1405
  %1466 = vst [vmem:[%s3 + $0x48] sm:$0xff] %v1446
  %1467 = vst [vmem:[%s3 + $0x50] sm:$0xff] %v1408
  %1468 = vst [vmem:[%s3 + $0x58] sm:$0xff] %v1449
  %1469 = vst [vmem:[%s3 + $0x60] sm:$0xff] %v1411
  %1470 = vst [vmem:[%s3 + $0x68] sm:$0xff] %v1452
  %1471 = vst [vmem:[%s3 + $0x70] sm:$0xff] %v1414
  %1472 = vst [vmem:[%s3 + $0x78] sm:$0xff] %v1455
  // Predicated region
  $region14: #{policy_forward.1} parent=0 // pred_check
    _
  $region15: #{policy_forward.1} parent=0 // pred_check_branch
    %1474 = sbr.rel (0) target = $region17
  $region16: #{policy_forward.1} parent=0 // pred_region
    _
  $region17: #{policy_forward.1} parent=0 // pred_fallthru
    _
  // Predicated region
  $region18: #{policy_forward.1} parent=0 // pred_check
    _
  $region19: #{policy_forward.1} parent=0 // pred_check_branch
    %1476 = sbr.rel (0) target = $region21
  $region20: #{policy_forward.1} parent=0 // pred_region
    _
  $region21: #{policy_forward.1} parent=0 // pred_fallthru
    _

</llo_original>
